<compile_context>
chip_gen: v5e
topology: v5e:2x2
jax: 0.10.0
libtpu: 0.0.40
codegen_flags: <defaults>
</compile_context>

<pallas_src>
import numpy as np
import jax
import jax.numpy as jnp
from jax.experimental import pallas as pl
from jax.experimental.pallas import tpu as pltpu

# ---------------- configuration (small shapes consistent with the module) ----
FILTER_LENGTH = 512                          # N (module default 1024, scaled down)
N_OVERLAP     = 4
HOP_LENGTH    = FILTER_LENGTH // N_OVERLAP   # H = 128 (maps onto 128 lanes)
WIN_LENGTH    = FILTER_LENGTH
CUTOFF        = FILTER_LENGTH // 2 + 1       # C = 257 frequency bins
CP            = 384                          # lane-padded cutoff (multiple of 128)
STRENGTH      = 0.1

BATCH     = 2
AUDIO_LEN = 15 * HOP_LENGTH                              # L = 1920
N_FRAMES  = AUDIO_LEN // HOP_LENGTH + 1                  # T = 16
OLA_LEN   = (N_FRAMES - 1) * HOP_LENGTH + FILTER_LENGTH  # 2432
R_ROWS    = OLA_LEN // HOP_LENGTH                        # 19 rows of 128
TRIM_ROW0 = (FILTER_LENGTH // 2) // HOP_LENGTH           # 2
OUT_ROWS  = AUDIO_LEN // HOP_LENGTH                      # 15 rows -> 1920 samples


# ---------------- STFT basis / window setup (deterministic, numpy) -----------
def make_stft_basis():
    N, C = FILTER_LENGTH, CUTOFF
    H = HOP_LENGTH
    fourier = np.fft.fft(np.eye(N))
    fb = np.vstack([np.real(fourier[:C, :]), np.imag(fourier[:C, :])])  # (2C, N)
    n = np.arange(WIN_LENGTH)
    win = 0.5 - 0.5 * np.cos(2.0 * np.pi * n / WIN_LENGTH)   # periodic hann
    forward_basis = fb * win[None, :]                        # (2C, N)
    scale = N / H
    inverse_basis = np.linalg.pinv(scale * fb).T * win[None, :]  # (2C, N)
    return forward_basis, inverse_basis, win


def window_sumsquare(win, n_frames):
    N, H = FILTER_LENGTH, HOP_LENGTH
    n = N + H * (n_frames - 1)
    x = np.zeros(n, dtype=np.float64)
    wsq = win ** 2
    for i in range(n_frames):
        s = i * H
        x[s:min(n, s + N)] += wsq[:max(0, min(N, n - s))]
    return x


# ---------------- Pallas kernel ----------------------------------------------
def denoiser_kernel(aud_ref, fwd_ref, inv_ref, bias_ref, norm_ref, out_ref, acc_ref):
    T = N_FRAMES
    H = HOP_LENGTH

    # Build the (T, N) frame matrix from hop-aligned rows of the padded audio:
    # frame f = rows f..f+3 of the (R_ROWS, H) view, concatenated on lanes.
    frames = jnp.concatenate(
        [aud_ref[0, pl.ds(j, T), :] for j in range(N_OVERLAP)], axis=-1)  # (T, 512)

    # Forward STFT: one fused MXU matmul -> [re | im], each half CP lanes.
    spec = jnp.dot(frames, fwd_ref[...], preferred_element_type=jnp.float32)  # (T, 768)
    re = spec[:, :CP]
    im = spec[:, CP:]

    # Spectral subtraction + clamp, expressed as a per-bin scale on (re, im):
    #   mag' * cos(phase) == (mag'/mag) * re   (and exactly 0 when mag == 0,
    #   since bias >= 0 implies clamp(0 - bias*strength, 0) == 0).
    mag = jnp.sqrt(re * re + im * im)
    inv_mag = jnp.where(mag > 0.0, pl.reciprocal(mag, approx=True), 0.0)
    mag_d = jnp.maximum(mag - bias_ref[...], 0.0)     # bias pre-scaled by strength
    s = mag_d * inv_mag                                # (T, CP)
    spec_d = jnp.concatenate([s, s], axis=-1) * spec   # (T, 768)

    # Inverse transform: one fused MXU matmul.
    rec = jnp.dot(spec_d, inv_ref[...], preferred_element_type=jnp.float32)  # (T, 512)

    # Overlap-add into the (R_ROWS, H) scratch: lane-chunk k of frame f lands
    # on row f + k (hop == one 128-lane row).
    acc_ref[...] = jnp.zeros_like(acc_ref)
    for k in range(N_OVERLAP):                          # static unroll (4 chunks)
        acc_ref[pl.ds(k, T), :] += rec[:, k * H:(k + 1) * H]

    # Window-sumsquare normalization (incl. filter_length/hop scaling), with
    # the filter_length//2 head/tail trim folded in -> output stored once.
    out_ref[0] = acc_ref[pl.ds(TRIM_ROW0, OUT_ROWS), :] * norm_ref[0]


def denoiser_forward(audio, fwd_fused, inv_fused, bias_scaled, norm3d):
    N = FILTER_LENGTH
    padded = jnp.pad(audio.astype(jnp.float32),
                     ((0, 0), (N // 2, N // 2)), mode="reflect")      # (B, 2432)
    aud_view = padded.reshape(BATCH, R_ROWS, HOP_LENGTH)              # (B, 19, 128)

    out = pl.pallas_call(
        denoiser_kernel,
        out_shape=jax.ShapeDtypeStruct((BATCH, OUT_ROWS, HOP_LENGTH), jnp.float32),
        grid_spec=pltpu.PrefetchScalarGridSpec(
            num_scalar_prefetch=0,
            grid=(BATCH,),
            in_specs=[
                pl.BlockSpec((1, R_ROWS, HOP_LENGTH), lambda b: (b, 0, 0)),
                pl.BlockSpec((FILTER_LENGTH, 2 * CP), lambda b: (0, 0)),
                pl.BlockSpec((2 * CP, FILTER_LENGTH), lambda b: (0, 0)),
                pl.BlockSpec((1, CP), lambda b: (0, 0)),
                pl.BlockSpec((1, OUT_ROWS, HOP_LENGTH), lambda b: (0, 0, 0)),
            ],
            out_specs=pl.BlockSpec((1, OUT_ROWS, HOP_LENGTH), lambda b: (b, 0, 0)),
            scratch_shapes=[pltpu.VMEM((R_ROWS, HOP_LENGTH), jnp.float32)],
        ),
        compiler_params=pltpu.CompilerParams(
            dimension_semantics=("parallel",)),
    )(aud_view, fwd_fused, inv_fused, bias_scaled, norm3d)

    return out.reshape(BATCH, AUDIO_LEN)[:, None, :]                  # (B, 1, L)


# ---------------- pure numpy reference (float64) -----------------------------
def reference_forward(audio_np, bias_mag, fwd_basis, inv_basis, norm):
    N, H, C = FILTER_LENGTH, HOP_LENGTH, CUTOFF
    B = audio_np.shape[0]
    padded = np.pad(audio_np, ((0, 0), (N // 2, N // 2)), mode="reflect")
    idx = np.arange(N_FRAMES)[:, None] * H + np.arange(N)[None, :]
    frames = padded[:, idx]                                    # (B, T, N)
    spec = frames @ fwd_basis.T                                # (B, T, 2C)
    re, im = spec[..., :C], spec[..., C:]
    mag = np.sqrt(re ** 2 + im ** 2)
    phase = np.arctan2(im, re)
    mag_d = np.maximum(mag - bias_mag[None] * STRENGTH, 0.0)
    rec = np.concatenate([mag_d * np.cos(phase), mag_d * np.sin(phase)], axis=-1)
    fr_out = rec @ inv_basis                                   # (B, T, N)
    out = np.zeros((B, OLA_LEN))
    for t in range(N_FRAMES):
        out[:, t * H: t * H + N] += fr_out[:, t]
    out = out * norm[None, :]
    out = out[:, N // 2: OLA_LEN - N // 2]
    return out[:, None, :]


# ---------------- main --------------------------------------------------------
if __name__ == "__main__":
    N, H, C = FILTER_LENGTH, HOP_LENGTH, CUTOFF
    fwd_basis, inv_basis, win = make_stft_basis()

    # bias_spec: the torch module runs an ONNX vocoder on a random mel and takes
    # the magnitude of STFT frame 0 of its output.
    # TODO(synk): ONNX model inference replaced by deterministic random bias audio.
    key = jax.random.PRNGKey(0)
    k_bias, k_audio = jax.random.split(key)
    bias_audio = np.asarray(
        jax.random.normal(k_bias, (1, 1024), dtype=jnp.float32), dtype=np.float64)
    bpad = np.pad(bias_audio, ((0, 0), (N // 2, N // 2)), mode="reflect")
    spec0 = bpad[:, :N] @ fwd_basis.T                          # (1, 2C), frame 0
    bias_mag = np.sqrt(spec0[:, :C] ** 2 + spec0[:, C:] ** 2)  # (1, C)

    wss = window_sumsquare(win, N_FRAMES)                      # (OLA_LEN,)
    tiny = np.finfo(np.float32).tiny
    norm = np.where(wss > tiny, (N / H) / wss, (N / H))

    # Fused, lane-padded kernel parameter arrays.
    fwd_fused_np = np.zeros((N, 2 * CP), np.float32)           # (512, 768)
    fwd_fused_np[:, :C] = fwd_basis[:C].T
    fwd_fused_np[:, CP:CP + C] = fwd_basis[C:].T
    inv_fused_np = np.zeros((2 * CP, N), np.float32)           # (768, 512)
    inv_fused_np[:C] = inv_basis[:C]
    inv_fused_np[CP:CP + C] = inv_basis[C:]
    bias_scaled_np = np.zeros((1, CP), np.float32)             # (1, 384), pre-scaled
    bias_scaled_np[0, :C] = bias_mag[0] * STRENGTH
    norm_trim = norm[N // 2: OLA_LEN - N // 2]                 # (1920,)

    fwd_fused = jnp.asarray(fwd_fused_np)
    inv_fused = jnp.asarray(inv_fused_np)
    bias_scaled = jnp.asarray(bias_scaled_np)
    norm3d = jnp.asarray(norm_trim.reshape(1, OUT_ROWS, H), dtype=jnp.float32)

    # Example input audio.
    audio = jax.random.normal(k_audio, (BATCH, AUDIO_LEN), dtype=jnp.float32)

    out = denoiser_forward(audio, fwd_fused, inv_fused, bias_scaled, norm3d)
    out = jax.block_until_ready(out)

    ref = reference_forward(np.asarray(audio, dtype=np.float64),
                            bias_mag, fwd_basis, inv_basis, norm)

    assert out.shape == (BATCH, 1, AUDIO_LEN)
    assert np.isfinite(np.asarray(out)).all()
    err = float(np.max(np.abs(np.asarray(out, dtype=np.float64) - ref)))
    assert err < 0.1, f"max abs err {err}"
    print("KERNEL_OK")
</pallas_src>

<mosaic_0001>
module attributes {stable_mosaic.version = 11 : i64} {
  func.func @denoiser_kernel(%arg0: i32, %arg1: memref<1x19x128xf32, #tpu.memory_space<vmem>>, %arg2: memref<512x768xf32, #tpu.memory_space<vmem>>, %arg3: memref<768x512xf32, #tpu.memory_space<vmem>>, %arg4: memref<1x384xf32, #tpu.memory_space<vmem>>, %arg5: memref<1x15x128xf32, #tpu.memory_space<vmem>>, %arg6: memref<1x15x128xf32, #tpu.memory_space<vmem>>, %arg7: memref<19x128xf32, #tpu.memory_space<vmem>>) attributes {dimension_semantics = [#tpu.dimension_semantics<parallel>], iteration_bounds = array<i64: 2>, scalar_prefetch = 0 : i64, scratch_operands = 1 : i64, tpu.core_type = #tpu.core_type<tc>, window_params = [{transform_indices = @transform_0, window_bounds = array<i64: 1, 19, 128>}, {pipeline_mode = #tpu.pipeline_mode<synchronous>, transform_indices = @transform_1, window_bounds = array<i64: 512, 768>}, {pipeline_mode = #tpu.pipeline_mode<synchronous>, transform_indices = @transform_2, window_bounds = array<i64: 768, 512>}, {pipeline_mode = #tpu.pipeline_mode<synchronous>, transform_indices = @transform_3, window_bounds = array<i64: 1, 384>}, {pipeline_mode = #tpu.pipeline_mode<synchronous>, transform_indices = @transform_4, window_bounds = array<i64: 1, 15, 128>}, {transform_indices = @transform_5, window_bounds = array<i64: 1, 15, 128>}]} {
    %c0 = arith.constant 0 : index
    %c0_0 = arith.constant 0 : index
    %c0_1 = arith.constant 0 : index
    %0 = vector.load %arg1[%c0, %c0_0, %c0_1] : memref<1x19x128xf32, #tpu.memory_space<vmem>>, vector<1x16x128xf32>
    %1 = vector.shape_cast %0 : vector<1x16x128xf32> to vector<16x128xf32>
    %c0_2 = arith.constant 0 : index
    %c1 = arith.constant 1 : index
    %c0_3 = arith.constant 0 : index
    %2 = vector.load %arg1[%c0_2, %c1, %c0_3] : memref<1x19x128xf32, #tpu.memory_space<vmem>>, vector<1x16x128xf32>
    %3 = vector.shape_cast %2 : vector<1x16x128xf32> to vector<16x128xf32>
    %c0_4 = arith.constant 0 : index
    %c2 = arith.constant 2 : index
    %c0_5 = arith.constant 0 : index
    %4 = vector.load %arg1[%c0_4, %c2, %c0_5] : memref<1x19x128xf32, #tpu.memory_space<vmem>>, vector<1x16x128xf32>
    %5 = vector.shape_cast %4 : vector<1x16x128xf32> to vector<16x128xf32>
    %c0_6 = arith.constant 0 : index
    %c3 = arith.constant 3 : index
    %c0_7 = arith.constant 0 : index
    %6 = vector.load %arg1[%c0_6, %c3, %c0_7] : memref<1x19x128xf32, #tpu.memory_space<vmem>>, vector<1x16x128xf32>
    %7 = vector.shape_cast %6 : vector<1x16x128xf32> to vector<16x128xf32>
    %8 = tpu.concatenate %1, %3, %5, %7 in 1 : vector<16x128xf32>, vector<16x128xf32>, vector<16x128xf32>, vector<16x128xf32> -> vector<16x512xf32>
    %c0_8 = arith.constant 0 : index
    %c0_9 = arith.constant 0 : index
    %9 = vector.load %arg2[%c0_8, %c0_9] : memref<512x768xf32, #tpu.memory_space<vmem>>, vector<512x768xf32>
    %cst = arith.constant dense<0.000000e+00> : vector<16x768xf32>
    %10 = tpu.matmul %8, %9, %cst {dimension_numbers = #tpu.dot_dimension_numbers<[1], [0], [0], [1], [0, 0, 1, 1], [], []>} : vector<16x512xf32>, vector<512x768xf32>, vector<16x768xf32> -> vector<16x768xf32>
    %11 = vector.extract_strided_slice %10 {offsets = [0, 0], sizes = [16, 384], strides = [1, 1]} : vector<16x768xf32> to vector<16x384xf32>
    %12 = vector.extract_strided_slice %10 {offsets = [0, 384], sizes = [16, 384], strides = [1, 1]} : vector<16x768xf32> to vector<16x384xf32>
    %13 = arith.mulf %11, %11 : vector<16x384xf32>
    %14 = arith.mulf %12, %12 : vector<16x384xf32>
    %15 = arith.addf %13, %14 : vector<16x384xf32>
    %16 = math.sqrt %15 : vector<16x384xf32>
    %cst_10 = arith.constant 0.000000e+00 : f32
    %17 = vector.broadcast %cst_10 : f32 to vector<16x384xf32>
    %18 = arith.cmpf ogt, %16, %17 : vector<16x384xf32>
    %19 = tpu.reciprocal %16 {approx = true} : vector<16x384xf32> -> vector<16x384xf32>
    %cst_11 = arith.constant 0.000000e+00 : f32
    %20 = vector.broadcast %cst_11 : f32 to vector<16x384xf32>
    %21 = arith.select %18, %19, %20 : vector<16x384xi1>, vector<16x384xf32>
    %c0_12 = arith.constant 0 : index
    %c0_13 = arith.constant 0 : index
    %22 = vector.load %arg4[%c0_12, %c0_13] : memref<1x384xf32, #tpu.memory_space<vmem>>, vector<1x384xf32>
    %23 = vector.broadcast %22 : vector<1x384xf32> to vector<16x384xf32>
    %24 = arith.subf %16, %23 : vector<16x384xf32>
    %cst_14 = arith.constant 0.000000e+00 : f32
    %25 = vector.broadcast %cst_14 : f32 to vector<16x384xf32>
    %26 = arith.maximumf %24, %25 : vector<16x384xf32>
    %27 = arith.mulf %26, %21 : vector<16x384xf32>
    %28 = tpu.concatenate %27, %27 in 1 : vector<16x384xf32>, vector<16x384xf32> -> vector<16x768xf32>
    %29 = arith.mulf %28, %10 : vector<16x768xf32>
    %c0_15 = arith.constant 0 : index
    %c0_16 = arith.constant 0 : index
    %30 = vector.load %arg3[%c0_15, %c0_16] : memref<768x512xf32, #tpu.memory_space<vmem>>, vector<768x512xf32>
    %cst_17 = arith.constant dense<0.000000e+00> : vector<16x512xf32>
    %31 = tpu.matmul %29, %30, %cst_17 {dimension_numbers = #tpu.dot_dimension_numbers<[1], [0], [0], [1], [0, 0, 1, 1], [], []>} : vector<16x768xf32>, vector<768x512xf32>, vector<16x512xf32> -> vector<16x512xf32>
    %cst_18 = arith.constant 0.000000e+00 : f32
    %32 = vector.broadcast %cst_18 : f32 to vector<19x128xf32>
    %c0_19 = arith.constant 0 : index
    %c0_20 = arith.constant 0 : index
    %33 = vector.load %arg7[%c0_19, %c0_20] : memref<19x128xf32, #tpu.memory_space<vmem>>, vector<19x128xf32>
    tpu.vector_store %arg7[%c0_19, %c0_20], %32 {strides = array<i32>} : memref<19x128xf32, #tpu.memory_space<vmem>>, vector<19x128xf32>,
    %c0_21 = arith.constant 0 : index
    %c0_22 = arith.constant 0 : index
    %34 = vector.load %arg7[%c0_21, %c0_22] : memref<19x128xf32, #tpu.memory_space<vmem>>, vector<16x128xf32>
    %35 = vector.extract_strided_slice %31 {offsets = [0, 0], sizes = [16, 128], strides = [1, 1]} : vector<16x512xf32> to vector<16x128xf32>
    %36 = arith.addf %34, %35 : vector<16x128xf32>
    %c0_23 = arith.constant 0 : index
    %c0_24 = arith.constant 0 : index
    %37 = vector.load %arg7[%c0_23, %c0_24] : memref<19x128xf32, #tpu.memory_space<vmem>>, vector<16x128xf32>
    tpu.vector_store %arg7[%c0_23, %c0_24], %36 {strides = array<i32>} : memref<19x128xf32, #tpu.memory_space<vmem>>, vector<16x128xf32>,
    %c1_25 = arith.constant 1 : index
    %c0_26 = arith.constant 0 : index
    %38 = vector.load %arg7[%c1_25, %c0_26] : memref<19x128xf32, #tpu.memory_space<vmem>>, vector<16x128xf32>
    %39 = vector.extract_strided_slice %31 {offsets = [0, 128], sizes = [16, 128], strides = [1, 1]} : vector<16x512xf32> to vector<16x128xf32>
    %40 = arith.addf %38, %39 : vector<16x128xf32>
    %c1_27 = arith.constant 1 : index
    %c0_28 = arith.constant 0 : index
    %41 = vector.load %arg7[%c1_27, %c0_28] : memref<19x128xf32, #tpu.memory_space<vmem>>, vector<16x128xf32>
    tpu.vector_store %arg7[%c1_27, %c0_28], %40 {strides = array<i32>} : memref<19x128xf32, #tpu.memory_space<vmem>>, vector<16x128xf32>,
    %c2_29 = arith.constant 2 : index
    %c0_30 = arith.constant 0 : index
    %42 = vector.load %arg7[%c2_29, %c0_30] : memref<19x128xf32, #tpu.memory_space<vmem>>, vector<16x128xf32>
    %43 = vector.extract_strided_slice %31 {offsets = [0, 256], sizes = [16, 128], strides = [1, 1]} : vector<16x512xf32> to vector<16x128xf32>
    %44 = arith.addf %42, %43 : vector<16x128xf32>
    %c2_31 = arith.constant 2 : index
    %c0_32 = arith.constant 0 : index
    %45 = vector.load %arg7[%c2_31, %c0_32] : memref<19x128xf32, #tpu.memory_space<vmem>>, vector<16x128xf32>
    tpu.vector_store %arg7[%c2_31, %c0_32], %44 {strides = array<i32>} : memref<19x128xf32, #tpu.memory_space<vmem>>, vector<16x128xf32>,
    %c3_33 = arith.constant 3 : index
    %c0_34 = arith.constant 0 : index
    %46 = vector.load %arg7[%c3_33, %c0_34] : memref<19x128xf32, #tpu.memory_space<vmem>>, vector<16x128xf32>
    %47 = vector.extract_strided_slice %31 {offsets = [0, 384], sizes = [16, 128], strides = [1, 1]} : vector<16x512xf32> to vector<16x128xf32>
    %48 = arith.addf %46, %47 : vector<16x128xf32>
    %c3_35 = arith.constant 3 : index
    %c0_36 = arith.constant 0 : index
    %49 = vector.load %arg7[%c3_35, %c0_36] : memref<19x128xf32, #tpu.memory_space<vmem>>, vector<16x128xf32>
    tpu.vector_store %arg7[%c3_35, %c0_36], %48 {strides = array<i32>} : memref<19x128xf32, #tpu.memory_space<vmem>>, vector<16x128xf32>,
    %c2_37 = arith.constant 2 : index
    %c0_38 = arith.constant 0 : index
    %50 = vector.load %arg7[%c2_37, %c0_38] : memref<19x128xf32, #tpu.memory_space<vmem>>, vector<15x128xf32>
    %c0_39 = arith.constant 0 : index
    %c0_40 = arith.constant 0 : index
    %c0_41 = arith.constant 0 : index
    %51 = vector.load %arg5[%c0_39, %c0_40, %c0_41] : memref<1x15x128xf32, #tpu.memory_space<vmem>>, vector<1x15x128xf32>
    %52 = vector.shape_cast %51 : vector<1x15x128xf32> to vector<15x128xf32>
    %53 = arith.mulf %50, %52 : vector<15x128xf32>
    %c0_42 = arith.constant 0 : index
    %c0_43 = arith.constant 0 : index
    %c0_44 = arith.constant 0 : index
    %54 = vector.load %arg6[%c0_42, %c0_43, %c0_44] : memref<1x15x128xf32, #tpu.memory_space<vmem>>, vector<1x15x128xf32>
    %55 = vector.shape_cast %54 : vector<1x15x128xf32> to vector<15x128xf32>
    %56 = vector.shape_cast %53 : vector<15x128xf32> to vector<1x15x128xf32>
    tpu.vector_store %arg6[%c0_42, %c0_43, %c0_44], %56 {strides = array<i32>} : memref<1x15x128xf32, #tpu.memory_space<vmem>>, vector<1x15x128xf32>,
    return
  }
  func.func @transform_0(%arg0: i32) -> (i32, i32, i32) {
    %c0_i32 = arith.constant 0 : i32
    %c0_i32_0 = arith.constant 0 : i32
    %c0_i32_1 = arith.constant 0 : i32
    return %arg0, %c0_i32, %c0_i32_0 : i32, i32, i32
  }
  func.func @transform_1(%arg0: i32) -> (i32, i32) {
    %c0_i32 = arith.constant 0 : i32
    %c0_i32_0 = arith.constant 0 : i32
    %c0_i32_1 = arith.constant 0 : i32
    return %c0_i32, %c0_i32_0 : i32, i32
  }
  func.func @transform_2(%arg0: i32) -> (i32, i32) {
    %c0_i32 = arith.constant 0 : i32
    %c0_i32_0 = arith.constant 0 : i32
    %c0_i32_1 = arith.constant 0 : i32
    return %c0_i32, %c0_i32_0 : i32, i32
  }
  func.func @transform_3(%arg0: i32) -> (i32, i32) {
    %c0_i32 = arith.constant 0 : i32
    %c0_i32_0 = arith.constant 0 : i32
    %c0_i32_1 = arith.constant 0 : i32
    return %c0_i32, %c0_i32_0 : i32, i32
  }
  func.func @transform_4(%arg0: i32) -> (i32, i32, i32) {
    %c0_i32 = arith.constant 0 : i32
    %c0_i32_0 = arith.constant 0 : i32
    %c0_i32_1 = arith.constant 0 : i32
    %c0_i32_2 = arith.constant 0 : i32
    return %c0_i32, %c0_i32_0, %c0_i32_1 : i32, i32, i32
  }
  func.func @transform_5(%arg0: i32) -> (i32, i32, i32) {
    %c0_i32 = arith.constant 0 : i32
    %c0_i32_0 = arith.constant 0 : i32
    %c0_i32_1 = arith.constant 0 : i32
    return %arg0, %c0_i32, %c0_i32_0 : i32, i32, i32
  }
}

</mosaic_0001>

<llo_original>
// kernel: tpu_custom_call.1
$region0: #{tpu_custom_call.1}
  #allocation0 [shape = 'u32[]', space=smem, size = 0x4, offset = 0x4, fixed_abs, tag = 'smem constant byte address 0x4 - core index']
  #allocation1 [shape = 'u32[72,128]{1,0:T(1,128)}', space=vmem, size = 0x9000, scoped, tag = 'internal scratch']
  #allocation2 [shape = 'f32[19,128]{1,0:T(8,128)}', space=vmem, size = 0x3000, scoped, tag = 'scratch operand']
  %s0 = inlined_call_operand.vmem [shape: f32[2,19,128], index: 0, kind: input, shape index: {}]
  %s1 = inlined_call_operand.hbm [shape: f32[512,768], index: 1, kind: input, shape index: {}]
  %s2 = inlined_call_operand.hbm [shape: f32[768,512], index: 2, kind: input, shape index: {}]
  %s3 = inlined_call_operand.hbm [shape: f32[1,384], index: 3, kind: input, shape index: {}]
  %s4 = inlined_call_operand.vmem [shape: f32[1,15,128], index: 4, kind: input, shape index: {}]
  %s5 = inlined_call_operand.vmem [shape: f32[2,15,128], index: 5, kind: output, shape index: {}]
  %s6 = sld [smem:[#allocation0]]
  $region65: #{tpu_custom_call.1} parent=0
    _
  %s8 = ssub.s32 1, %s6
  %s9 = scalar_select 0, %s8, %s6
  $region1: #{tpu_custom_call.1} parent=0
    #allocation3 [shape = 'u8[1572864]{0}', space=vmem, size = 0x180000, scoped, tag = 'input window, operand 1, single buffered']
    #allocation4 [shape = 's32[2]{0}', space=sflag, size = 0x8, scoped, tag = 'scoped memory for tpu_custom_call.1']
    #allocation5 [shape = 'u8[1572864]{0}', space=vmem, size = 0x180000, scoped, tag = 'input window, operand 2, single buffered']
    #allocation6 [shape = 's32[1]{0}', space=sflag, size = 0x4, scoped, tag = 'scoped memory for tpu_custom_call.1']
    #allocation7 [shape = 'u8[1536]{0}', space=vmem, size = 0x800, scoped, tag = 'input window, operand 3, single buffered']
    %10 = vsyncpa [#allocation4], 0
    %11 = vsyncpa [#allocation6], 0
    loop: start=0, step=1, limit=4
    $region2: #{tpu_custom_call.1} parent=1 // loop_pre_header
      _
    $region3: #{tpu_custom_call.1} parent=1 // loop_header
      %s13 = sphi 0, %s17
      %p14 = scmp.ge.s32.totalorder %s13, 4
      %s23 = sphi 0, %s25
      %s26 = sphi 0, %s23
      %s27 = sphi 0, %s26
      %s43 = sphi 0, %s27
      %s47 = sphi 0, %s47
      %s49 = sphi 0, %s47
      %s50 = sphi 0, %s49
      %s64 = sphi 0, %s50
      %s68 = sphi 0, %s68
      %s70 = sphi 0, %s68
      %s71 = sphi 0, %s70
      %s85 = sphi 0, %s71
      %s89 = sphi 0, %s89
      %s91 = sphi 0, %s89
      %s92 = sphi 0, %s91
      %s106 = sphi 0, %s92
      %s110 = sphi 0, %s110
      %s112 = sphi 0, %s110
      %s113 = sphi 0, %s112
      %s127 = sphi 0, %s113
      %s133 = sphi 0, %s135
      %s136 = sphi 0, %s133
      %s137 = sphi 0, %s136
      %s153 = sphi 0, %s137
    $region4: #{tpu_custom_call.1} parent=1 // loop_header_branch
      %16 = sbr.rel (%p14) target = $region8
    $region5: #{tpu_custom_call.1} parent=1 // loop_body
      %s18 = ssub.s32 %s13, 1
      %s19 = ssub.s32 %s13, 2
      %s20 = sadd.s32 %s13, 1
      %s21 = ssub.s32 %s13, %s20
      %p22 = scmp.eq.s32.totalorder %s21, 0
      %s24 = sadd.s32 %s23, 1
      %s25 = scalar_select %p22, %s23, %s24
      %p28 = pneg %p22
      %p29 = scmp.eq.s32.totalorder %s13, 1
      %p30 = por %p28, %p29
      %p31 = scmp.ne.s32.totalorder %s23, %s26
      %p32 = scmp.eq.s32.totalorder %s13, 0
      %p33 = por %p31, %p32
      %p34 = scmp.ne.s32.totalorder %s23, %s26
      %p35 = scmp.eq.s32.totalorder %s18, 1
      %p36 = por %p34, %p35
      %p37 = scmp.ne.s32.totalorder %s26, %s27
      %p38 = scmp.eq.s32.totalorder %s18, 0
      %p39 = por %p37, %p38
      %p40 = scmp.ne.s32.totalorder %s26, %s27
      %p41 = scmp.eq.s32.totalorder %s19, 1
      %p42 = por %p40, %p41
      %p44 = scmp.ne.s32.totalorder %s27, %s43
      %p45 = scmp.eq.s32.totalorder %s19, 0
      %p46 = por %p44, %p45
      %s48 = sadd.s32 %s47, 1
      %p51 = scmp.eq.s32.totalorder %s13, 1
      %p52 = scmp.ne.s32.totalorder %s47, %s49
      %p53 = scmp.eq.s32.totalorder %s13, 0
      %p54 = por %p52, %p53
      %p55 = scmp.ne.s32.totalorder %s47, %s49
      %p56 = scmp.eq.s32.totalorder %s18, 1
      %p57 = por %p55, %p56
      %p58 = scmp.ne.s32.totalorder %s49, %s50
      %p59 = scmp.eq.s32.totalorder %s18, 0
      %p60 = por %p58, %p59
      %p61 = scmp.ne.s32.totalorder %s49, %s50
      %p62 = scmp.eq.s32.totalorder %s19, 1
      %p63 = por %p61, %p62
      %p65 = scmp.ne.s32.totalorder %s50, %s64
      %p66 = scmp.eq.s32.totalorder %s19, 0
      %p67 = por %p65, %p66
      %s69 = sadd.s32 %s68, 1
      %p72 = scmp.eq.s32.totalorder %s13, 1
      %p73 = scmp.ne.s32.totalorder %s68, %s70
      %p74 = scmp.eq.s32.totalorder %s13, 0
      %p75 = por %p73, %p74
      %p76 = scmp.ne.s32.totalorder %s68, %s70
      %p77 = scmp.eq.s32.totalorder %s18, 1
      %p78 = por %p76, %p77
      %p79 = scmp.ne.s32.totalorder %s70, %s71
      %p80 = scmp.eq.s32.totalorder %s18, 0
      %p81 = por %p79, %p80
      %p82 = scmp.ne.s32.totalorder %s70, %s71
      %p83 = scmp.eq.s32.totalorder %s19, 1
      %p84 = por %p82, %p83
      %p86 = scmp.ne.s32.totalorder %s71, %s85
      %p87 = scmp.eq.s32.totalorder %s19, 0
      %p88 = por %p86, %p87
      %s90 = sadd.s32 %s89, 1
      %p93 = scmp.eq.s32.totalorder %s13, 1
      %p94 = scmp.ne.s32.totalorder %s89, %s91
      %p95 = scmp.eq.s32.totalorder %s13, 0
      %p96 = por %p94, %p95
      %p97 = scmp.ne.s32.totalorder %s89, %s91
      %p98 = scmp.eq.s32.totalorder %s18, 1
      %p99 = por %p97, %p98
      %p100 = scmp.ne.s32.totalorder %s91, %s92
      %p101 = scmp.eq.s32.totalorder %s18, 0
      %p102 = por %p100, %p101
      %p103 = scmp.ne.s32.totalorder %s91, %s92
      %p104 = scmp.eq.s32.totalorder %s19, 1
      %p105 = por %p103, %p104
      %p107 = scmp.ne.s32.totalorder %s92, %s106
      %p108 = scmp.eq.s32.totalorder %s19, 0
      %p109 = por %p107, %p108
      %s111 = sadd.s32 %s110, 1
      %p114 = scmp.eq.s32.totalorder %s13, 1
      %p115 = scmp.ne.s32.totalorder %s110, %s112
      %p116 = scmp.eq.s32.totalorder %s13, 0
      %p117 = por %p115, %p116
      %p118 = scmp.ne.s32.totalorder %s110, %s112
      %p119 = scmp.eq.s32.totalorder %s18, 1
      %p120 = por %p118, %p119
      %p121 = scmp.ne.s32.totalorder %s112, %s113
      %p122 = scmp.eq.s32.totalorder %s18, 0
      %p123 = por %p121, %p122
      %p124 = scmp.ne.s32.totalorder %s112, %s113
      %p125 = scmp.eq.s32.totalorder %s19, 1
      %p126 = por %p124, %p125
      %p128 = scmp.ne.s32.totalorder %s113, %s127
      %p129 = scmp.eq.s32.totalorder %s19, 0
      %p130 = por %p128, %p129
      %s131 = ssub.s32 %s13, %s20
      %p132 = scmp.eq.s32.totalorder %s131, 0
      %s134 = sadd.s32 %s133, 1
      %s135 = scalar_select %p132, %s133, %s134
      %p138 = pneg %p132
      %p139 = scmp.eq.s32.totalorder %s13, 1
      %p140 = por %p138, %p139
      %p141 = scmp.ne.s32.totalorder %s133, %s136
      %p142 = scmp.eq.s32.totalorder %s13, 0
      %p143 = por %p141, %p142
      %p144 = scmp.ne.s32.totalorder %s133, %s136
      %p145 = scmp.eq.s32.totalorder %s18, 1
      %p146 = por %p144, %p145
      %p147 = scmp.ne.s32.totalorder %s136, %s137
      %p148 = scmp.eq.s32.totalorder %s18, 0
      %p149 = por %p147, %p148
      %p150 = scmp.ne.s32.totalorder %s136, %s137
      %p151 = scmp.eq.s32.totalorder %s19, 1
      %p152 = por %p150, %p151
      %p154 = scmp.ne.s32.totalorder %s137, %s153
      %p155 = scmp.eq.s32.totalorder %s19, 0
      %p156 = por %p154, %p155
      %p157 = scmp.le.s32.totalorder 1, %s13
      %p158 = scmp.lt.s32.totalorder %s13, 3
      %p159 = pnand %p157, %p158
      %p160 = pneg %p159
      // Predicated region
      $region9: #{tpu_custom_call.1} parent=5 // pred_check
        _
      $region10: #{tpu_custom_call.1} parent=5 // pred_check_branch
        %162 = sbr.rel (%p159) target = $region12
      $region11: #{tpu_custom_call.1} parent=5 // pred_region
        %s163 = ssub.s32 %s13, 1
        // Predicated region
        $region13: #{tpu_custom_call.1} parent=11 // pred_check
          %p164 = pneg %p60
        $region14: #{tpu_custom_call.1} parent=11 // pred_check_branch
          %166 = sbr.rel (%p164) target = $region16
        $region15: #{tpu_custom_call.1} parent=11 // pred_region
          %168 = vsyncadd [#allocation4], 0
          %s169 = sshll.u32 %s1, 4
          %s170 = int_to_ptr.hbm [resolvable:$true] %s169
          %s171 = sshll.u32 [#allocation3], 4
          %s172 = int_to_ptr.vmem [resolvable:$true] %s171
          %177 = dma.hbm_to_vmem [thread:$0]  %s170, 49152, %s172, [#allocation4], 768, 768, 48
        $region16: #{tpu_custom_call.1} parent=11 // pred_fallthru
          _
        // Predicated region
        $region17: #{tpu_custom_call.1} parent=11 // pred_check
          %p178 = pneg %p81
        $region18: #{tpu_custom_call.1} parent=11 // pred_check_branch
          %180 = sbr.rel (%p178) target = $region20
        $region19: #{tpu_custom_call.1} parent=11 // pred_region
          %182 = vsyncadd [#allocation6], 0
          %s183 = sshll.u32 %s2, 4
          %s184 = int_to_ptr.hbm [resolvable:$true] %s183
          %s185 = sshll.u32 [#allocation5], 4
          %s186 = int_to_ptr.vmem [resolvable:$true] %s185
          %191 = dma.hbm_to_vmem [thread:$0]  %s184, 49152, %s186, [#allocation6], 512, 512, 32
        $region20: #{tpu_custom_call.1} parent=11 // pred_fallthru
          _
        // Predicated region
        $region21: #{tpu_custom_call.1} parent=11 // pred_check
          %p192 = pneg %p102
        $region22: #{tpu_custom_call.1} parent=11 // pred_check_branch
          %194 = sbr.rel (%p192) target = $region24
        $region23: #{tpu_custom_call.1} parent=11 // pred_region
          %196 = vsyncadd [#allocation6], 0
          %s198 = sshll.u32 %s3, 4
          %s199 = int_to_ptr.hbm [resolvable:$true] %s198
          %s200 = sshll.u32 [#allocation7], 4
          %s201 = int_to_ptr.vmem [resolvable:$true] %s200
          %203 = dma.hbm_to_vmem [thread:$0]  %s199, 48, %s201, [#allocation6]
        $region24: #{tpu_custom_call.1} parent=11 // pred_fallthru
          _
        // Predicated region
        $region25: #{tpu_custom_call.1} parent=11 // pred_check
          %p204 = pneg %p123
        $region26: #{tpu_custom_call.1} parent=11 // pred_check_branch
          %206 = sbr.rel (%p204) target = $region28
        $region27: #{tpu_custom_call.1} parent=11 // pred_region
          _
        $region28: #{tpu_custom_call.1} parent=11 // pred_fallthru
          _
      $region12: #{tpu_custom_call.1} parent=5 // pred_fallthru
        _
      %p207 = scmp.lt.s32.totalorder %s13, 2
      // Predicated region
      $region29: #{tpu_custom_call.1} parent=5 // pred_check
        %p208 = pneg %p207
      $region30: #{tpu_custom_call.1} parent=5 // pred_check_branch
        %210 = sbr.rel (%p208) target = $region32
      $region31: #{tpu_custom_call.1} parent=5 // pred_region
        // Predicated region
        $region33: #{tpu_custom_call.1} parent=31 // pred_check
          %p211 = pneg %p33
        $region34: #{tpu_custom_call.1} parent=31 // pred_check_branch
          %213 = sbr.rel (%p211) target = $region36
        $region35: #{tpu_custom_call.1} parent=31 // pred_region
          %p214 = scmp.lt.s32.totalorder %s13, 1
          %s215 = scalar_select %p214, %s13, 1
          %s216 = smul.addr %s215, 3
          %s217 = smul.addr %s216, 8
          %s218 = scalar_lea.vmem %s0, %s217
        $region36: #{tpu_custom_call.1} parent=31 // pred_fallthru
          _
      $region32: #{tpu_custom_call.1} parent=5 // pred_fallthru
        _
      %p219 = scmp.le.s32.totalorder 1, %s13
      %p220 = scmp.lt.s32.totalorder %s13, 3
      %p221 = pnand %p219, %p220
      %p222 = pneg %p221
      // Predicated region
      $region37: #{tpu_custom_call.1} parent=5 // pred_check
        _
      $region38: #{tpu_custom_call.1} parent=5 // pred_check_branch
        %224 = sbr.rel (%p221) target = $region40
      $region39: #{tpu_custom_call.1} parent=5 // pred_region
        %s225 = ssub.s32 %s13, 1
        // Predicated region
        $region41: #{tpu_custom_call.1} parent=39 // pred_check
          %p226 = pneg %p60
        $region42: #{tpu_custom_call.1} parent=39 // pred_check_branch
          %228 = sbr.rel (%p226) target = $region44
        $region43: #{tpu_custom_call.1} parent=39 // pred_region
          %230 = dma.done [#allocation4], 49152
        $region44: #{tpu_custom_call.1} parent=39 // pred_fallthru
          _
        // Predicated region
        $region45: #{tpu_custom_call.1} parent=39 // pred_check
          %p231 = pneg %p81
        $region46: #{tpu_custom_call.1} parent=39 // pred_check_branch
          %233 = sbr.rel (%p231) target = $region48
        $region47: #{tpu_custom_call.1} parent=39 // pred_region
          %235 = dma.done [#allocation6], 49152
        $region48: #{tpu_custom_call.1} parent=39 // pred_fallthru
          _
        // Predicated region
        $region49: #{tpu_custom_call.1} parent=39 // pred_check
          %p236 = pneg %p102
        $region50: #{tpu_custom_call.1} parent=39 // pred_check_branch
          %238 = sbr.rel (%p236) target = $region52
        $region51: #{tpu_custom_call.1} parent=39 // pred_region
          %240 = dma.done [#allocation6], 48
        $region52: #{tpu_custom_call.1} parent=39 // pred_fallthru
          _
        %p241 = scmp.lt.s32.totalorder %s18, 1
        %s242 = scalar_select %p241, %s18, 1
        %s243 = smul.addr %s242, 3
        %s244 = smul.addr %s243, 8
        %s245 = scalar_lea.vmem %s0, %s244
        %p246 = pneg %p39
        %p247 = pneg %p36
        %p248 = pneg %p60
        %p249 = pneg %p57
        %p250 = pneg %p81
        %p251 = pneg %p78
        %p252 = pneg %p102
        %p253 = pneg %p99
        %p254 = pneg %p123
        %p255 = pneg %p120
        %p256 = pneg %p149
        %p257 = pneg %p146
        %p258 = scmp.lt.s32.totalorder %s18, 1
        %s259 = scalar_select %p258, %s18, 1
        %s260 = smul.addr %s259, 2
        %s261 = smul.addr %s260, 8
        %s262 = scalar_lea.vmem %s5, %s261
        %p263 = scmp.lt.s32.totalorder %s18, 1
        %s264 = scalar_select %p263, %s18, 1
        %s265 = smul.addr %s264, 3
        %s266 = smul.addr %s265, 8
        %s267 = scalar_lea.vmem %s0, %s266
        %p268 = scmp.lt.s32.totalorder %s18, 1
        %s269 = scalar_select %p268, %s18, 1
        %s270 = smul.addr %s269, 2
        %s271 = smul.addr %s270, 8
        %s272 = scalar_lea.vmem %s5, %s271
        %v273 = vld [vmem:[%s267] sm:$0xff]
        %v274 = vld [vmem:[%s267 + $0x8] sm:$0xff]
        %v275 = vld [vmem:[%s267 + $0x1] sm:$0xff]
        %v276 = vld [vmem:[%s267 + $0x9] sm:$0xff]
        %v277 = vld [vmem:[%s267 + $0x2] sm:$0xff]
        %v278 = vld [vmem:[%s267 + $0xa] sm:$0xff]
        %v279 = vld [vmem:[%s267 + $0x3] sm:$0xff]
        %v280 = vld [vmem:[%s267 + $0xb] sm:$0xff]
        %v281 = vld [vmem:[#allocation3] sm:$0xff]
        %v282 = vld [vmem:[#allocation3 + $0x8] sm:$0xff]
        %v283 = vld [vmem:[#allocation3 + $0x10] sm:$0xff]
        %v284 = vld [vmem:[#allocation3 + $0x18] sm:$0xff]
        %v285 = vld [vmem:[#allocation3 + $0x20] sm:$0xff]
        %v286 = vld [vmem:[#allocation3 + $0x28] sm:$0xff]
        %v287 = vld [vmem:[#allocation3 + $0x30] sm:$0xff]
        %v288 = vld [vmem:[#allocation3 + $0x38] sm:$0xff]
        %v289 = vld [vmem:[#allocation3 + $0x40] sm:$0xff]
        %v290 = vld [vmem:[#allocation3 + $0x48] sm:$0xff]
        %v291 = vld [vmem:[#allocation3 + $0x50] sm:$0xff]
        %v292 = vld [vmem:[#allocation3 + $0x58] sm:$0xff]
        %v293 = vld [vmem:[#allocation3 + $0x60] sm:$0xff]
        %v294 = vld [vmem:[#allocation3 + $0x68] sm:$0xff]
        %v295 = vld [vmem:[#allocation3 + $0x70] sm:$0xff]
        %v296 = vld [vmem:[#allocation3 + $0x78] sm:$0xff]
        %v297 = vld [vmem:[#allocation3 + $0x80] sm:$0xff]
        %v298 = vld [vmem:[#allocation3 + $0x88] sm:$0xff]
        %v299 = vld [vmem:[#allocation3 + $0x90] sm:$0xff]
        %v300 = vld [vmem:[#allocation3 + $0x98] sm:$0xff]
        %v301 = vld [vmem:[#allocation3 + $0xa0] sm:$0xff]
        %v302 = vld [vmem:[#allocation3 + $0xa8] sm:$0xff]
        %v303 = vld [vmem:[#allocation3 + $0xb0] sm:$0xff]
        %v304 = vld [vmem:[#allocation3 + $0xb8] sm:$0xff]
        %v305 = vld [vmem:[#allocation3 + $0xc0] sm:$0xff]
        %v306 = vld [vmem:[#allocation3 + $0xc8] sm:$0xff]
        %v307 = vld [vmem:[#allocation3 + $0xd0] sm:$0xff]
        %v308 = vld [vmem:[#allocation3 + $0xd8] sm:$0xff]
        %v309 = vld [vmem:[#allocation3 + $0xe0] sm:$0xff]
        %v310 = vld [vmem:[#allocation3 + $0xe8] sm:$0xff]
        %v311 = vld [vmem:[#allocation3 + $0xf0] sm:$0xff]
        %v312 = vld [vmem:[#allocation3 + $0xf8] sm:$0xff]
        %v313 = vld [vmem:[#allocation3 + $0x100] sm:$0xff]
        %v314 = vld [vmem:[#allocation3 + $0x108] sm:$0xff]
        %v315 = vld [vmem:[#allocation3 + $0x110] sm:$0xff]
        %v316 = vld [vmem:[#allocation3 + $0x118] sm:$0xff]
        %v317 = vld [vmem:[#allocation3 + $0x120] sm:$0xff]
        %v318 = vld [vmem:[#allocation3 + $0x128] sm:$0xff]
        %v319 = vld [vmem:[#allocation3 + $0x130] sm:$0xff]
        %v320 = vld [vmem:[#allocation3 + $0x138] sm:$0xff]
        %v321 = vld [vmem:[#allocation3 + $0x140] sm:$0xff]
        %v322 = vld [vmem:[#allocation3 + $0x148] sm:$0xff]
        %v323 = vld [vmem:[#allocation3 + $0x150] sm:$0xff]
        %v324 = vld [vmem:[#allocation3 + $0x158] sm:$0xff]
        %v325 = vld [vmem:[#allocation3 + $0x160] sm:$0xff]
        %v326 = vld [vmem:[#allocation3 + $0x168] sm:$0xff]
        %v327 = vld [vmem:[#allocation3 + $0x170] sm:$0xff]
        %v328 = vld [vmem:[#allocation3 + $0x178] sm:$0xff]
        %v329 = vld [vmem:[#allocation3 + $0x180] sm:$0xff]
        %v330 = vld [vmem:[#allocation3 + $0x188] sm:$0xff]
        %v331 = vld [vmem:[#allocation3 + $0x190] sm:$0xff]
        %v332 = vld [vmem:[#allocation3 + $0x198] sm:$0xff]
        %v333 = vld [vmem:[#allocation3 + $0x1a0] sm:$0xff]
        %v334 = vld [vmem:[#allocation3 + $0x1a8] sm:$0xff]
        %v335 = vld [vmem:[#allocation3 + $0x1b0] sm:$0xff]
        %v336 = vld [vmem:[#allocation3 + $0x1b8] sm:$0xff]
        %v337 = vld [vmem:[#allocation3 + $0x1c0] sm:$0xff]
        %v338 = vld [vmem:[#allocation3 + $0x1c8] sm:$0xff]
        %v339 = vld [vmem:[#allocation3 + $0x1d0] sm:$0xff]
        %v340 = vld [vmem:[#allocation3 + $0x1d8] sm:$0xff]
        %v341 = vld [vmem:[#allocation3 + $0x1e0] sm:$0xff]
        %v342 = vld [vmem:[#allocation3 + $0x1e8] sm:$0xff]
        %v343 = vld [vmem:[#allocation3 + $0x1f0] sm:$0xff]
        %v344 = vld [vmem:[#allocation3 + $0x1f8] sm:$0xff]
        %v345 = vld [vmem:[#allocation3 + $0x200] sm:$0xff]
        %v346 = vld [vmem:[#allocation3 + $0x208] sm:$0xff]
        %v347 = vld [vmem:[#allocation3 + $0x210] sm:$0xff]
        %v348 = vld [vmem:[#allocation3 + $0x218] sm:$0xff]
        %v349 = vld [vmem:[#allocation3 + $0x220] sm:$0xff]
        %v350 = vld [vmem:[#allocation3 + $0x228] sm:$0xff]
        %v351 = vld [vmem:[#allocation3 + $0x230] sm:$0xff]
        %v352 = vld [vmem:[#allocation3 + $0x238] sm:$0xff]
        %v353 = vld [vmem:[#allocation3 + $0x240] sm:$0xff]
        %v354 = vld [vmem:[#allocation3 + $0x248] sm:$0xff]
        %v355 = vld [vmem:[#allocation3 + $0x250] sm:$0xff]
        %v356 = vld [vmem:[#allocation3 + $0x258] sm:$0xff]
        %v357 = vld [vmem:[#allocation3 + $0x260] sm:$0xff]
        %v358 = vld [vmem:[#allocation3 + $0x268] sm:$0xff]
        %v359 = vld [vmem:[#allocation3 + $0x270] sm:$0xff]
        %v360 = vld [vmem:[#allocation3 + $0x278] sm:$0xff]
        %v361 = vld [vmem:[#allocation3 + $0x280] sm:$0xff]
        %v362 = vld [vmem:[#allocation3 + $0x288] sm:$0xff]
        %v363 = vld [vmem:[#allocation3 + $0x290] sm:$0xff]
        %v364 = vld [vmem:[#allocation3 + $0x298] sm:$0xff]
        %v365 = vld [vmem:[#allocation3 + $0x2a0] sm:$0xff]
        %v366 = vld [vmem:[#allocation3 + $0x2a8] sm:$0xff]
        %v367 = vld [vmem:[#allocation3 + $0x2b0] sm:$0xff]
        %v368 = vld [vmem:[#allocation3 + $0x2b8] sm:$0xff]
        %v369 = vld [vmem:[#allocation3 + $0x2c0] sm:$0xff]
        %v370 = vld [vmem:[#allocation3 + $0x2c8] sm:$0xff]
        %v371 = vld [vmem:[#allocation3 + $0x2d0] sm:$0xff]
        %v372 = vld [vmem:[#allocation3 + $0x2d8] sm:$0xff]
        %v373 = vld [vmem:[#allocation3 + $0x2e0] sm:$0xff]
        %v374 = vld [vmem:[#allocation3 + $0x2e8] sm:$0xff]
        %v375 = vld [vmem:[#allocation3 + $0x2f0] sm:$0xff]
        %v376 = vld [vmem:[#allocation3 + $0x2f8] sm:$0xff]
        %v377 = vld [vmem:[#allocation3 + $0x300] sm:$0xff]
        %v378 = vld [vmem:[#allocation3 + $0x308] sm:$0xff]
        %v379 = vld [vmem:[#allocation3 + $0x310] sm:$0xff]
        %v380 = vld [vmem:[#allocation3 + $0x318] sm:$0xff]
        %v381 = vld [vmem:[#allocation3 + $0x320] sm:$0xff]
        %v382 = vld [vmem:[#allocation3 + $0x328] sm:$0xff]
        %v383 = vld [vmem:[#allocation3 + $0x330] sm:$0xff]
        %v384 = vld [vmem:[#allocation3 + $0x338] sm:$0xff]
        %v385 = vld [vmem:[#allocation3 + $0x340] sm:$0xff]
        %v386 = vld [vmem:[#allocation3 + $0x348] sm:$0xff]
        %v387 = vld [vmem:[#allocation3 + $0x350] sm:$0xff]
        %v388 = vld [vmem:[#allocation3 + $0x358] sm:$0xff]
        %v389 = vld [vmem:[#allocation3 + $0x360] sm:$0xff]
        %v390 = vld [vmem:[#allocation3 + $0x368] sm:$0xff]
        %v391 = vld [vmem:[#allocation3 + $0x370] sm:$0xff]
        %v392 = vld [vmem:[#allocation3 + $0x378] sm:$0xff]
        %v393 = vld [vmem:[#allocation3 + $0x380] sm:$0xff]
        %v394 = vld [vmem:[#allocation3 + $0x388] sm:$0xff]
        %v395 = vld [vmem:[#allocation3 + $0x390] sm:$0xff]
        %v396 = vld [vmem:[#allocation3 + $0x398] sm:$0xff]
        %v397 = vld [vmem:[#allocation3 + $0x3a0] sm:$0xff]
        %v398 = vld [vmem:[#allocation3 + $0x3a8] sm:$0xff]
        %v399 = vld [vmem:[#allocation3 + $0x3b0] sm:$0xff]
        %v400 = vld [vmem:[#allocation3 + $0x3b8] sm:$0xff]
        %v401 = vld [vmem:[#allocation3 + $0x3c0] sm:$0xff]
        %v402 = vld [vmem:[#allocation3 + $0x3c8] sm:$0xff]
        %v403 = vld [vmem:[#allocation3 + $0x3d0] sm:$0xff]
        %v404 = vld [vmem:[#allocation3 + $0x3d8] sm:$0xff]
        %v405 = vld [vmem:[#allocation3 + $0x3e0] sm:$0xff]
        %v406 = vld [vmem:[#allocation3 + $0x3e8] sm:$0xff]
        %v407 = vld [vmem:[#allocation3 + $0x3f0] sm:$0xff]
        %v408 = vld [vmem:[#allocation3 + $0x3f8] sm:$0xff]
        %v409 = vld [vmem:[#allocation3 + $0x400] sm:$0xff]
        %v410 = vld [vmem:[#allocation3 + $0x408] sm:$0xff]
        %v411 = vld [vmem:[#allocation3 + $0x410] sm:$0xff]
        %v412 = vld [vmem:[#allocation3 + $0x418] sm:$0xff]
        %v413 = vld [vmem:[#allocation3 + $0x420] sm:$0xff]
        %v414 = vld [vmem:[#allocation3 + $0x428] sm:$0xff]
        %v415 = vld [vmem:[#allocation3 + $0x430] sm:$0xff]
        %v416 = vld [vmem:[#allocation3 + $0x438] sm:$0xff]
        %v417 = vld [vmem:[#allocation3 + $0x440] sm:$0xff]
        %v418 = vld [vmem:[#allocation3 + $0x448] sm:$0xff]
        %v419 = vld [vmem:[#allocation3 + $0x450] sm:$0xff]
        %v420 = vld [vmem:[#allocation3 + $0x458] sm:$0xff]
        %v421 = vld [vmem:[#allocation3 + $0x460] sm:$0xff]
        %v422 = vld [vmem:[#allocation3 + $0x468] sm:$0xff]
        %v423 = vld [vmem:[#allocation3 + $0x470] sm:$0xff]
        %v424 = vld [vmem:[#allocation3 + $0x478] sm:$0xff]
        %v425 = vld [vmem:[#allocation3 + $0x480] sm:$0xff]
        %v426 = vld [vmem:[#allocation3 + $0x488] sm:$0xff]
        %v427 = vld [vmem:[#allocation3 + $0x490] sm:$0xff]
        %v428 = vld [vmem:[#allocation3 + $0x498] sm:$0xff]
        %v429 = vld [vmem:[#allocation3 + $0x4a0] sm:$0xff]
        %v430 = vld [vmem:[#allocation3 + $0x4a8] sm:$0xff]
        %v431 = vld [vmem:[#allocation3 + $0x4b0] sm:$0xff]
        %v432 = vld [vmem:[#allocation3 + $0x4b8] sm:$0xff]
        %v433 = vld [vmem:[#allocation3 + $0x4c0] sm:$0xff]
        %v434 = vld [vmem:[#allocation3 + $0x4c8] sm:$0xff]
        %v435 = vld [vmem:[#allocation3 + $0x4d0] sm:$0xff]
        %v436 = vld [vmem:[#allocation3 + $0x4d8] sm:$0xff]
        %v437 = vld [vmem:[#allocation3 + $0x4e0] sm:$0xff]
        %v438 = vld [vmem:[#allocation3 + $0x4e8] sm:$0xff]
        %v439 = vld [vmem:[#allocation3 + $0x4f0] sm:$0xff]
        %v440 = vld [vmem:[#allocation3 + $0x4f8] sm:$0xff]
        %v441 = vld [vmem:[#allocation3 + $0x500] sm:$0xff]
        %v442 = vld [vmem:[#allocation3 + $0x508] sm:$0xff]
        %v443 = vld [vmem:[#allocation3 + $0x510] sm:$0xff]
        %v444 = vld [vmem:[#allocation3 + $0x518] sm:$0xff]
        %v445 = vld [vmem:[#allocation3 + $0x520] sm:$0xff]
        %v446 = vld [vmem:[#allocation3 + $0x528] sm:$0xff]
        %v447 = vld [vmem:[#allocation3 + $0x530] sm:$0xff]
        %v448 = vld [vmem:[#allocation3 + $0x538] sm:$0xff]
        %v449 = vld [vmem:[#allocation3 + $0x540] sm:$0xff]
        %v450 = vld [vmem:[#allocation3 + $0x548] sm:$0xff]
        %v451 = vld [vmem:[#allocation3 + $0x550] sm:$0xff]
        %v452 = vld [vmem:[#allocation3 + $0x558] sm:$0xff]
        %v453 = vld [vmem:[#allocation3 + $0x560] sm:$0xff]
        %v454 = vld [vmem:[#allocation3 + $0x568] sm:$0xff]
        %v455 = vld [vmem:[#allocation3 + $0x570] sm:$0xff]
        %v456 = vld [vmem:[#allocation3 + $0x578] sm:$0xff]
        %v457 = vld [vmem:[#allocation3 + $0x580] sm:$0xff]
        %v458 = vld [vmem:[#allocation3 + $0x588] sm:$0xff]
        %v459 = vld [vmem:[#allocation3 + $0x590] sm:$0xff]
        %v460 = vld [vmem:[#allocation3 + $0x598] sm:$0xff]
        %v461 = vld [vmem:[#allocation3 + $0x5a0] sm:$0xff]
        %v462 = vld [vmem:[#allocation3 + $0x5a8] sm:$0xff]
        %v463 = vld [vmem:[#allocation3 + $0x5b0] sm:$0xff]
        %v464 = vld [vmem:[#allocation3 + $0x5b8] sm:$0xff]
        %v465 = vld [vmem:[#allocation3 + $0x5c0] sm:$0xff]
        %v466 = vld [vmem:[#allocation3 + $0x5c8] sm:$0xff]
        %v467 = vld [vmem:[#allocation3 + $0x5d0] sm:$0xff]
        %v468 = vld [vmem:[#allocation3 + $0x5d8] sm:$0xff]
        %v469 = vld [vmem:[#allocation3 + $0x5e0] sm:$0xff]
        %v470 = vld [vmem:[#allocation3 + $0x5e8] sm:$0xff]
        %v471 = vld [vmem:[#allocation3 + $0x5f0] sm:$0xff]
        %v472 = vld [vmem:[#allocation3 + $0x5f8] sm:$0xff]
        %v473 = vld [vmem:[#allocation3 + $0x600] sm:$0xff]
        %v474 = vld [vmem:[#allocation3 + $0x608] sm:$0xff]
        %v475 = vld [vmem:[#allocation3 + $0x610] sm:$0xff]
        %v476 = vld [vmem:[#allocation3 + $0x618] sm:$0xff]
        %v477 = vld [vmem:[#allocation3 + $0x620] sm:$0xff]
        %v478 = vld [vmem:[#allocation3 + $0x628] sm:$0xff]
        %v479 = vld [vmem:[#allocation3 + $0x630] sm:$0xff]
        %v480 = vld [vmem:[#allocation3 + $0x638] sm:$0xff]
        %v481 = vld [vmem:[#allocation3 + $0x640] sm:$0xff]
        %v482 = vld [vmem:[#allocation3 + $0x648] sm:$0xff]
        %v483 = vld [vmem:[#allocation3 + $0x650] sm:$0xff]
        %v484 = vld [vmem:[#allocation3 + $0x658] sm:$0xff]
        %v485 = vld [vmem:[#allocation3 + $0x660] sm:$0xff]
        %v486 = vld [vmem:[#allocation3 + $0x668] sm:$0xff]
        %v487 = vld [vmem:[#allocation3 + $0x670] sm:$0xff]
        %v488 = vld [vmem:[#allocation3 + $0x678] sm:$0xff]
        %v489 = vld [vmem:[#allocation3 + $0x680] sm:$0xff]
        %v490 = vld [vmem:[#allocation3 + $0x688] sm:$0xff]
        %v491 = vld [vmem:[#allocation3 + $0x690] sm:$0xff]
        %v492 = vld [vmem:[#allocation3 + $0x698] sm:$0xff]
        %v493 = vld [vmem:[#allocation3 + $0x6a0] sm:$0xff]
        %v494 = vld [vmem:[#allocation3 + $0x6a8] sm:$0xff]
        %v495 = vld [vmem:[#allocation3 + $0x6b0] sm:$0xff]
        %v496 = vld [vmem:[#allocation3 + $0x6b8] sm:$0xff]
        %v497 = vld [vmem:[#allocation3 + $0x6c0] sm:$0xff]
        %v498 = vld [vmem:[#allocation3 + $0x6c8] sm:$0xff]
        %v499 = vld [vmem:[#allocation3 + $0x6d0] sm:$0xff]
        %v500 = vld [vmem:[#allocation3 + $0x6d8] sm:$0xff]
        %v501 = vld [vmem:[#allocation3 + $0x6e0] sm:$0xff]
        %v502 = vld [vmem:[#allocation3 + $0x6e8] sm:$0xff]
        %v503 = vld [vmem:[#allocation3 + $0x6f0] sm:$0xff]
        %v504 = vld [vmem:[#allocation3 + $0x6f8] sm:$0xff]
        %v505 = vld [vmem:[#allocation3 + $0x700] sm:$0xff]
        %v506 = vld [vmem:[#allocation3 + $0x708] sm:$0xff]
        %v507 = vld [vmem:[#allocation3 + $0x710] sm:$0xff]
        %v508 = vld [vmem:[#allocation3 + $0x718] sm:$0xff]
        %v509 = vld [vmem:[#allocation3 + $0x720] sm:$0xff]
        %v510 = vld [vmem:[#allocation3 + $0x728] sm:$0xff]
        %v511 = vld [vmem:[#allocation3 + $0x730] sm:$0xff]
        %v512 = vld [vmem:[#allocation3 + $0x738] sm:$0xff]
        %v513 = vld [vmem:[#allocation3 + $0x740] sm:$0xff]
        %v514 = vld [vmem:[#allocation3 + $0x748] sm:$0xff]
        %v515 = vld [vmem:[#allocation3 + $0x750] sm:$0xff]
        %v516 = vld [vmem:[#allocation3 + $0x758] sm:$0xff]
        %v517 = vld [vmem:[#allocation3 + $0x760] sm:$0xff]
        %v518 = vld [vmem:[#allocation3 + $0x768] sm:$0xff]
        %v519 = vld [vmem:[#allocation3 + $0x770] sm:$0xff]
        %v520 = vld [vmem:[#allocation3 + $0x778] sm:$0xff]
        %v521 = vld [vmem:[#allocation3 + $0x780] sm:$0xff]
        %v522 = vld [vmem:[#allocation3 + $0x788] sm:$0xff]
        %v523 = vld [vmem:[#allocation3 + $0x790] sm:$0xff]
        %v524 = vld [vmem:[#allocation3 + $0x798] sm:$0xff]
        %v525 = vld [vmem:[#allocation3 + $0x7a0] sm:$0xff]
        %v526 = vld [vmem:[#allocation3 + $0x7a8] sm:$0xff]
        %v527 = vld [vmem:[#allocation3 + $0x7b0] sm:$0xff]
        %v528 = vld [vmem:[#allocation3 + $0x7b8] sm:$0xff]
        %v529 = vld [vmem:[#allocation3 + $0x7c0] sm:$0xff]
        %v530 = vld [vmem:[#allocation3 + $0x7c8] sm:$0xff]
        %v531 = vld [vmem:[#allocation3 + $0x7d0] sm:$0xff]
        %v532 = vld [vmem:[#allocation3 + $0x7d8] sm:$0xff]
        %v533 = vld [vmem:[#allocation3 + $0x7e0] sm:$0xff]
        %v534 = vld [vmem:[#allocation3 + $0x7e8] sm:$0xff]
        %v535 = vld [vmem:[#allocation3 + $0x7f0] sm:$0xff]
        %v536 = vld [vmem:[#allocation3 + $0x7f8] sm:$0xff]
        %v537 = vld [vmem:[#allocation3 + $0x800] sm:$0xff]
        %v538 = vld [vmem:[#allocation3 + $0x808] sm:$0xff]
        %v539 = vld [vmem:[#allocation3 + $0x810] sm:$0xff]
        %v540 = vld [vmem:[#allocation3 + $0x818] sm:$0xff]
        %v541 = vld [vmem:[#allocation3 + $0x820] sm:$0xff]
        %v542 = vld [vmem:[#allocation3 + $0x828] sm:$0xff]
        %v543 = vld [vmem:[#allocation3 + $0x830] sm:$0xff]
        %v544 = vld [vmem:[#allocation3 + $0x838] sm:$0xff]
        %v545 = vld [vmem:[#allocation3 + $0x840] sm:$0xff]
        %v546 = vld [vmem:[#allocation3 + $0x848] sm:$0xff]
        %v547 = vld [vmem:[#allocation3 + $0x850] sm:$0xff]
        %v548 = vld [vmem:[#allocation3 + $0x858] sm:$0xff]
        %v549 = vld [vmem:[#allocation3 + $0x860] sm:$0xff]
        %v550 = vld [vmem:[#allocation3 + $0x868] sm:$0xff]
        %v551 = vld [vmem:[#allocation3 + $0x870] sm:$0xff]
        %v552 = vld [vmem:[#allocation3 + $0x878] sm:$0xff]
        %v553 = vld [vmem:[#allocation3 + $0x880] sm:$0xff]
        %v554 = vld [vmem:[#allocation3 + $0x888] sm:$0xff]
        %v555 = vld [vmem:[#allocation3 + $0x890] sm:$0xff]
        %v556 = vld [vmem:[#allocation3 + $0x898] sm:$0xff]
        %v557 = vld [vmem:[#allocation3 + $0x8a0] sm:$0xff]
        %v558 = vld [vmem:[#allocation3 + $0x8a8] sm:$0xff]
        %v559 = vld [vmem:[#allocation3 + $0x8b0] sm:$0xff]
        %v560 = vld [vmem:[#allocation3 + $0x8b8] sm:$0xff]
        %v561 = vld [vmem:[#allocation3 + $0x8c0] sm:$0xff]
        %v562 = vld [vmem:[#allocation3 + $0x8c8] sm:$0xff]
        %v563 = vld [vmem:[#allocation3 + $0x8d0] sm:$0xff]
        %v564 = vld [vmem:[#allocation3 + $0x8d8] sm:$0xff]
        %v565 = vld [vmem:[#allocation3 + $0x8e0] sm:$0xff]
        %v566 = vld [vmem:[#allocation3 + $0x8e8] sm:$0xff]
        %v567 = vld [vmem:[#allocation3 + $0x8f0] sm:$0xff]
        %v568 = vld [vmem:[#allocation3 + $0x8f8] sm:$0xff]
        %v569 = vld [vmem:[#allocation3 + $0x900] sm:$0xff]
        %v570 = vld [vmem:[#allocation3 + $0x908] sm:$0xff]
        %v571 = vld [vmem:[#allocation3 + $0x910] sm:$0xff]
        %v572 = vld [vmem:[#allocation3 + $0x918] sm:$0xff]
        %v573 = vld [vmem:[#allocation3 + $0x920] sm:$0xff]
        %v574 = vld [vmem:[#allocation3 + $0x928] sm:$0xff]
        %v575 = vld [vmem:[#allocation3 + $0x930] sm:$0xff]
        %v576 = vld [vmem:[#allocation3 + $0x938] sm:$0xff]
        %v577 = vld [vmem:[#allocation3 + $0x940] sm:$0xff]
        %v578 = vld [vmem:[#allocation3 + $0x948] sm:$0xff]
        %v579 = vld [vmem:[#allocation3 + $0x950] sm:$0xff]
        %v580 = vld [vmem:[#allocation3 + $0x958] sm:$0xff]
        %v581 = vld [vmem:[#allocation3 + $0x960] sm:$0xff]
        %v582 = vld [vmem:[#allocation3 + $0x968] sm:$0xff]
        %v583 = vld [vmem:[#allocation3 + $0x970] sm:$0xff]
        %v584 = vld [vmem:[#allocation3 + $0x978] sm:$0xff]
        %v585 = vld [vmem:[#allocation3 + $0x980] sm:$0xff]
        %v586 = vld [vmem:[#allocation3 + $0x988] sm:$0xff]
        %v587 = vld [vmem:[#allocation3 + $0x990] sm:$0xff]
        %v588 = vld [vmem:[#allocation3 + $0x998] sm:$0xff]
        %v589 = vld [vmem:[#allocation3 + $0x9a0] sm:$0xff]
        %v590 = vld [vmem:[#allocation3 + $0x9a8] sm:$0xff]
        %v591 = vld [vmem:[#allocation3 + $0x9b0] sm:$0xff]
        %v592 = vld [vmem:[#allocation3 + $0x9b8] sm:$0xff]
        %v593 = vld [vmem:[#allocation3 + $0x9c0] sm:$0xff]
        %v594 = vld [vmem:[#allocation3 + $0x9c8] sm:$0xff]
        %v595 = vld [vmem:[#allocation3 + $0x9d0] sm:$0xff]
        %v596 = vld [vmem:[#allocation3 + $0x9d8] sm:$0xff]
        %v597 = vld [vmem:[#allocation3 + $0x9e0] sm:$0xff]
        %v598 = vld [vmem:[#allocation3 + $0x9e8] sm:$0xff]
        %v599 = vld [vmem:[#allocation3 + $0x9f0] sm:$0xff]
        %v600 = vld [vmem:[#allocation3 + $0x9f8] sm:$0xff]
        %v601 = vld [vmem:[#allocation3 + $0xa00] sm:$0xff]
        %v602 = vld [vmem:[#allocation3 + $0xa08] sm:$0xff]
        %v603 = vld [vmem:[#allocation3 + $0xa10] sm:$0xff]
        %v604 = vld [vmem:[#allocation3 + $0xa18] sm:$0xff]
        %v605 = vld [vmem:[#allocation3 + $0xa20] sm:$0xff]
        %v606 = vld [vmem:[#allocation3 + $0xa28] sm:$0xff]
        %v607 = vld [vmem:[#allocation3 + $0xa30] sm:$0xff]
        %v608 = vld [vmem:[#allocation3 + $0xa38] sm:$0xff]
        %v609 = vld [vmem:[#allocation3 + $0xa40] sm:$0xff]
        %v610 = vld [vmem:[#allocation3 + $0xa48] sm:$0xff]
        %v611 = vld [vmem:[#allocation3 + $0xa50] sm:$0xff]
        %v612 = vld [vmem:[#allocation3 + $0xa58] sm:$0xff]
        %v613 = vld [vmem:[#allocation3 + $0xa60] sm:$0xff]
        %v614 = vld [vmem:[#allocation3 + $0xa68] sm:$0xff]
        %v615 = vld [vmem:[#allocation3 + $0xa70] sm:$0xff]
        %v616 = vld [vmem:[#allocation3 + $0xa78] sm:$0xff]
        %v617 = vld [vmem:[#allocation3 + $0xa80] sm:$0xff]
        %v618 = vld [vmem:[#allocation3 + $0xa88] sm:$0xff]
        %v619 = vld [vmem:[#allocation3 + $0xa90] sm:$0xff]
        %v620 = vld [vmem:[#allocation3 + $0xa98] sm:$0xff]
        %v621 = vld [vmem:[#allocation3 + $0xaa0] sm:$0xff]
        %v622 = vld [vmem:[#allocation3 + $0xaa8] sm:$0xff]
        %v623 = vld [vmem:[#allocation3 + $0xab0] sm:$0xff]
        %v624 = vld [vmem:[#allocation3 + $0xab8] sm:$0xff]
        %v625 = vld [vmem:[#allocation3 + $0xac0] sm:$0xff]
        %v626 = vld [vmem:[#allocation3 + $0xac8] sm:$0xff]
        %v627 = vld [vmem:[#allocation3 + $0xad0] sm:$0xff]
        %v628 = vld [vmem:[#allocation3 + $0xad8] sm:$0xff]
        %v629 = vld [vmem:[#allocation3 + $0xae0] sm:$0xff]
        %v630 = vld [vmem:[#allocation3 + $0xae8] sm:$0xff]
        %v631 = vld [vmem:[#allocation3 + $0xaf0] sm:$0xff]
        %v632 = vld [vmem:[#allocation3 + $0xaf8] sm:$0xff]
        %v633 = vld [vmem:[#allocation3 + $0xb00] sm:$0xff]
        %v634 = vld [vmem:[#allocation3 + $0xb08] sm:$0xff]
        %v635 = vld [vmem:[#allocation3 + $0xb10] sm:$0xff]
        %v636 = vld [vmem:[#allocation3 + $0xb18] sm:$0xff]
        %v637 = vld [vmem:[#allocation3 + $0xb20] sm:$0xff]
        %v638 = vld [vmem:[#allocation3 + $0xb28] sm:$0xff]
        %v639 = vld [vmem:[#allocation3 + $0xb30] sm:$0xff]
        %v640 = vld [vmem:[#allocation3 + $0xb38] sm:$0xff]
        %v641 = vld [vmem:[#allocation3 + $0xb40] sm:$0xff]
        %v642 = vld [vmem:[#allocation3 + $0xb48] sm:$0xff]
        %v643 = vld [vmem:[#allocation3 + $0xb50] sm:$0xff]
        %v644 = vld [vmem:[#allocation3 + $0xb58] sm:$0xff]
        %v645 = vld [vmem:[#allocation3 + $0xb60] sm:$0xff]
        %v646 = vld [vmem:[#allocation3 + $0xb68] sm:$0xff]
        %v647 = vld [vmem:[#allocation3 + $0xb70] sm:$0xff]
        %v648 = vld [vmem:[#allocation3 + $0xb78] sm:$0xff]
        %v649 = vld [vmem:[#allocation3 + $0xb80] sm:$0xff]
        %v650 = vld [vmem:[#allocation3 + $0xb88] sm:$0xff]
        %v651 = vld [vmem:[#allocation3 + $0xb90] sm:$0xff]
        %v652 = vld [vmem:[#allocation3 + $0xb98] sm:$0xff]
        %v653 = vld [vmem:[#allocation3 + $0xba0] sm:$0xff]
        %v654 = vld [vmem:[#allocation3 + $0xba8] sm:$0xff]
        %v655 = vld [vmem:[#allocation3 + $0xbb0] sm:$0xff]
        %v656 = vld [vmem:[#allocation3 + $0xbb8] sm:$0xff]
        %v657 = vld [vmem:[#allocation3 + $0xbc0] sm:$0xff]
        %v658 = vld [vmem:[#allocation3 + $0xbc8] sm:$0xff]
        %v659 = vld [vmem:[#allocation3 + $0xbd0] sm:$0xff]
        %v660 = vld [vmem:[#allocation3 + $0xbd8] sm:$0xff]
        %v661 = vld [vmem:[#allocation3 + $0xbe0] sm:$0xff]
        %v662 = vld [vmem:[#allocation3 + $0xbe8] sm:$0xff]
        %v663 = vld [vmem:[#allocation3 + $0xbf0] sm:$0xff]
        %v664 = vld [vmem:[#allocation3 + $0xbf8] sm:$0xff]
        %665 = vmatpush.msra.mxu0 %v371
        %666 = vmatpush.msra.mxu0 %v365
        %667 = vmatpush.msra.mxu0 %v359
        %668 = vmatpush.msra.mxu0 %v353
        %669 = vmatpush.msra.mxu0 %v347
        %670 = vmatpush.msra.mxu0 %v341
        %671 = vmatpush.msra.mxu0 %v335
        %672 = vmatpush.msra.mxu0 %v329
        %673 = vmatpush.msra.mxu0 %v323
        %674 = vmatpush.msra.mxu0 %v317
        %675 = vmatpush.msra.mxu0 %v311
        %676 = vmatpush.msra.mxu0 %v305
        %677 = vmatpush.msra.mxu0 %v299
        %678 = vmatpush.msra.mxu0 %v293
        %679 = vmatpush.msra.mxu0 %v287
        %680 = vmatpush.msra.mxu0 %v281
        %681 = vmatmul.f32.gmra.mxu0 %v273
        %v682 = vpop.f32.mrf.mxu0
        %v683 = vadd.f32 0.0, %v682
        %684 = vmatmul.f32.gmra.mxu0 %v274
        %v685 = vpop.f32.mrf.mxu0
        %v686 = vadd.f32 0.0, %v685
        %687 = vdwg.mxu0
        %688 = vmatpush.msra.mxu0 %v467
        %689 = vmatpush.msra.mxu0 %v461
        %690 = vmatpush.msra.mxu0 %v455
        %691 = vmatpush.msra.mxu0 %v449
        %692 = vmatpush.msra.mxu0 %v443
        %693 = vmatpush.msra.mxu0 %v437
        %694 = vmatpush.msra.mxu0 %v431
        %695 = vmatpush.msra.mxu0 %v425
        %696 = vmatpush.msra.mxu0 %v419
        %697 = vmatpush.msra.mxu0 %v413
        %698 = vmatpush.msra.mxu0 %v407
        %699 = vmatpush.msra.mxu0 %v401
        %700 = vmatpush.msra.mxu0 %v395
        %701 = vmatpush.msra.mxu0 %v389
        %702 = vmatpush.msra.mxu0 %v383
        %703 = vmatpush.msra.mxu0 %v377
        %704 = vmatmul.f32.gmra.mxu0 %v275
        %v705 = vpop.f32.mrf.mxu0
        %v706 = vadd.f32 %v683, %v705
        %707 = vmatmul.f32.gmra.mxu0 %v276
        %v708 = vpop.f32.mrf.mxu0
        %v709 = vadd.f32 %v686, %v708
        %710 = vdwg.mxu0
        %711 = vmatpush.msra.mxu0 %v563
        %712 = vmatpush.msra.mxu0 %v557
        %713 = vmatpush.msra.mxu0 %v551
        %714 = vmatpush.msra.mxu0 %v545
        %715 = vmatpush.msra.mxu0 %v539
        %716 = vmatpush.msra.mxu0 %v533
        %717 = vmatpush.msra.mxu0 %v527
        %718 = vmatpush.msra.mxu0 %v521
        %719 = vmatpush.msra.mxu0 %v515
        %720 = vmatpush.msra.mxu0 %v509
        %721 = vmatpush.msra.mxu0 %v503
        %722 = vmatpush.msra.mxu0 %v497
        %723 = vmatpush.msra.mxu0 %v491
        %724 = vmatpush.msra.mxu0 %v485
        %725 = vmatpush.msra.mxu0 %v479
        %726 = vmatpush.msra.mxu0 %v473
        %727 = vmatmul.f32.gmra.mxu0 %v277
        %v728 = vpop.f32.mrf.mxu0
        %v729 = vadd.f32 %v706, %v728
        %730 = vmatmul.f32.gmra.mxu0 %v278
        %v731 = vpop.f32.mrf.mxu0
        %v732 = vadd.f32 %v709, %v731
        %733 = vdwg.mxu0
        %734 = vmatpush.msra.mxu0 %v659
        %735 = vmatpush.msra.mxu0 %v653
        %736 = vmatpush.msra.mxu0 %v647
        %737 = vmatpush.msra.mxu0 %v641
        %738 = vmatpush.msra.mxu0 %v635
        %739 = vmatpush.msra.mxu0 %v629
        %740 = vmatpush.msra.mxu0 %v623
        %741 = vmatpush.msra.mxu0 %v617
        %742 = vmatpush.msra.mxu0 %v611
        %743 = vmatpush.msra.mxu0 %v605
        %744 = vmatpush.msra.mxu0 %v599
        %745 = vmatpush.msra.mxu0 %v593
        %746 = vmatpush.msra.mxu0 %v587
        %747 = vmatpush.msra.mxu0 %v581
        %748 = vmatpush.msra.mxu0 %v575
        %749 = vmatpush.msra.mxu0 %v569
        %750 = vmatmul.f32.gmra.mxu0 %v279
        %v751 = vpop.f32.mrf.mxu0
        %v752 = vadd.f32 %v729, %v751
        %753 = vmatmul.f32.gmra.mxu0 %v280
        %v754 = vpop.f32.mrf.mxu0
        %v755 = vadd.f32 %v732, %v754
        %756 = vdwg.mxu0
        %757 = vmatpush.msra.mxu0 %v372
        %758 = vmatpush.msra.mxu0 %v366
        %759 = vmatpush.msra.mxu0 %v360
        %760 = vmatpush.msra.mxu0 %v354
        %761 = vmatpush.msra.mxu0 %v348
        %762 = vmatpush.msra.mxu0 %v342
        %763 = vmatpush.msra.mxu0 %v336
        %764 = vmatpush.msra.mxu0 %v330
        %765 = vmatpush.msra.mxu0 %v324
        %766 = vmatpush.msra.mxu0 %v318
        %767 = vmatpush.msra.mxu0 %v312
        %768 = vmatpush.msra.mxu0 %v306
        %769 = vmatpush.msra.mxu0 %v300
        %770 = vmatpush.msra.mxu0 %v294
        %771 = vmatpush.msra.mxu0 %v288
        %772 = vmatpush.msra.mxu0 %v282
        %773 = vmatmul.f32.gmra.mxu0 %v273
        %v774 = vpop.f32.mrf.mxu0
        %v775 = vadd.f32 0.0, %v774
        %776 = vmatmul.f32.gmra.mxu0 %v274
        %v777 = vpop.f32.mrf.mxu0
        %v778 = vadd.f32 0.0, %v777
        %779 = vdwg.mxu0
        %780 = vmatpush.msra.mxu0 %v468
        %781 = vmatpush.msra.mxu0 %v462
        %782 = vmatpush.msra.mxu0 %v456
        %783 = vmatpush.msra.mxu0 %v450
        %784 = vmatpush.msra.mxu0 %v444
        %785 = vmatpush.msra.mxu0 %v438
        %786 = vmatpush.msra.mxu0 %v432
        %787 = vmatpush.msra.mxu0 %v426
        %788 = vmatpush.msra.mxu0 %v420
        %789 = vmatpush.msra.mxu0 %v414
        %790 = vmatpush.msra.mxu0 %v408
        %791 = vmatpush.msra.mxu0 %v402
        %792 = vmatpush.msra.mxu0 %v396
        %793 = vmatpush.msra.mxu0 %v390
        %794 = vmatpush.msra.mxu0 %v384
        %795 = vmatpush.msra.mxu0 %v378
        %796 = vmatmul.f32.gmra.mxu0 %v275
        %v797 = vpop.f32.mrf.mxu0
        %v798 = vadd.f32 %v775, %v797
        %799 = vmatmul.f32.gmra.mxu0 %v276
        %v800 = vpop.f32.mrf.mxu0
        %v801 = vadd.f32 %v778, %v800
        %802 = vdwg.mxu0
        %803 = vmatpush.msra.mxu0 %v564
        %804 = vmatpush.msra.mxu0 %v558
        %805 = vmatpush.msra.mxu0 %v552
        %806 = vmatpush.msra.mxu0 %v546
        %807 = vmatpush.msra.mxu0 %v540
        %808 = vmatpush.msra.mxu0 %v534
        %809 = vmatpush.msra.mxu0 %v528
        %810 = vmatpush.msra.mxu0 %v522
        %811 = vmatpush.msra.mxu0 %v516
        %812 = vmatpush.msra.mxu0 %v510
        %813 = vmatpush.msra.mxu0 %v504
        %814 = vmatpush.msra.mxu0 %v498
        %815 = vmatpush.msra.mxu0 %v492
        %816 = vmatpush.msra.mxu0 %v486
        %817 = vmatpush.msra.mxu0 %v480
        %818 = vmatpush.msra.mxu0 %v474
        %819 = vmatmul.f32.gmra.mxu0 %v277
        %v820 = vpop.f32.mrf.mxu0
        %v821 = vadd.f32 %v798, %v820
        %822 = vmatmul.f32.gmra.mxu0 %v278
        %v823 = vpop.f32.mrf.mxu0
        %v824 = vadd.f32 %v801, %v823
        %825 = vdwg.mxu0
        %826 = vmatpush.msra.mxu0 %v660
        %827 = vmatpush.msra.mxu0 %v654
        %828 = vmatpush.msra.mxu0 %v648
        %829 = vmatpush.msra.mxu0 %v642
        %830 = vmatpush.msra.mxu0 %v636
        %831 = vmatpush.msra.mxu0 %v630
        %832 = vmatpush.msra.mxu0 %v624
        %833 = vmatpush.msra.mxu0 %v618
        %834 = vmatpush.msra.mxu0 %v612
        %835 = vmatpush.msra.mxu0 %v606
        %836 = vmatpush.msra.mxu0 %v600
        %837 = vmatpush.msra.mxu0 %v594
        %838 = vmatpush.msra.mxu0 %v588
        %839 = vmatpush.msra.mxu0 %v582
        %840 = vmatpush.msra.mxu0 %v576
        %841 = vmatpush.msra.mxu0 %v570
        %842 = vmatmul.f32.gmra.mxu0 %v279
        %v843 = vpop.f32.mrf.mxu0
        %v844 = vadd.f32 %v821, %v843
        %845 = vmatmul.f32.gmra.mxu0 %v280
        %v846 = vpop.f32.mrf.mxu0
        %v847 = vadd.f32 %v824, %v846
        %848 = vdwg.mxu0
        %849 = vmatpush.msra.mxu0 %v373
        %850 = vmatpush.msra.mxu0 %v367
        %851 = vmatpush.msra.mxu0 %v361
        %852 = vmatpush.msra.mxu0 %v355
        %853 = vmatpush.msra.mxu0 %v349
        %854 = vmatpush.msra.mxu0 %v343
        %855 = vmatpush.msra.mxu0 %v337
        %856 = vmatpush.msra.mxu0 %v331
        %857 = vmatpush.msra.mxu0 %v325
        %858 = vmatpush.msra.mxu0 %v319
        %859 = vmatpush.msra.mxu0 %v313
        %860 = vmatpush.msra.mxu0 %v307
        %861 = vmatpush.msra.mxu0 %v301
        %862 = vmatpush.msra.mxu0 %v295
        %863 = vmatpush.msra.mxu0 %v289
        %864 = vmatpush.msra.mxu0 %v283
        %865 = vmatmul.f32.gmra.mxu0 %v273
        %v866 = vpop.f32.mrf.mxu0
        %v867 = vadd.f32 0.0, %v866
        %868 = vmatmul.f32.gmra.mxu0 %v274
        %v869 = vpop.f32.mrf.mxu0
        %v870 = vadd.f32 0.0, %v869
        %871 = vdwg.mxu0
        %872 = vmatpush.msra.mxu0 %v469
        %873 = vmatpush.msra.mxu0 %v463
        %874 = vmatpush.msra.mxu0 %v457
        %875 = vmatpush.msra.mxu0 %v451
        %876 = vmatpush.msra.mxu0 %v445
        %877 = vmatpush.msra.mxu0 %v439
        %878 = vmatpush.msra.mxu0 %v433
        %879 = vmatpush.msra.mxu0 %v427
        %880 = vmatpush.msra.mxu0 %v421
        %881 = vmatpush.msra.mxu0 %v415
        %882 = vmatpush.msra.mxu0 %v409
        %883 = vmatpush.msra.mxu0 %v403
        %884 = vmatpush.msra.mxu0 %v397
        %885 = vmatpush.msra.mxu0 %v391
        %886 = vmatpush.msra.mxu0 %v385
        %887 = vmatpush.msra.mxu0 %v379
        %888 = vmatmul.f32.gmra.mxu0 %v275
        %v889 = vpop.f32.mrf.mxu0
        %v890 = vadd.f32 %v867, %v889
        %891 = vmatmul.f32.gmra.mxu0 %v276
        %v892 = vpop.f32.mrf.mxu0
        %v893 = vadd.f32 %v870, %v892
        %894 = vdwg.mxu0
        %895 = vmatpush.msra.mxu0 %v565
        %896 = vmatpush.msra.mxu0 %v559
        %897 = vmatpush.msra.mxu0 %v553
        %898 = vmatpush.msra.mxu0 %v547
        %899 = vmatpush.msra.mxu0 %v541
        %900 = vmatpush.msra.mxu0 %v535
        %901 = vmatpush.msra.mxu0 %v529
        %902 = vmatpush.msra.mxu0 %v523
        %903 = vmatpush.msra.mxu0 %v517
        %904 = vmatpush.msra.mxu0 %v511
        %905 = vmatpush.msra.mxu0 %v505
        %906 = vmatpush.msra.mxu0 %v499
        %907 = vmatpush.msra.mxu0 %v493
        %908 = vmatpush.msra.mxu0 %v487
        %909 = vmatpush.msra.mxu0 %v481
        %910 = vmatpush.msra.mxu0 %v475
        %911 = vmatmul.f32.gmra.mxu0 %v277
        %v912 = vpop.f32.mrf.mxu0
        %v913 = vadd.f32 %v890, %v912
        %914 = vmatmul.f32.gmra.mxu0 %v278
        %v915 = vpop.f32.mrf.mxu0
        %v916 = vadd.f32 %v893, %v915
        %917 = vdwg.mxu0
        %918 = vmatpush.msra.mxu0 %v661
        %919 = vmatpush.msra.mxu0 %v655
        %920 = vmatpush.msra.mxu0 %v649
        %921 = vmatpush.msra.mxu0 %v643
        %922 = vmatpush.msra.mxu0 %v637
        %923 = vmatpush.msra.mxu0 %v631
        %924 = vmatpush.msra.mxu0 %v625
        %925 = vmatpush.msra.mxu0 %v619
        %926 = vmatpush.msra.mxu0 %v613
        %927 = vmatpush.msra.mxu0 %v607
        %928 = vmatpush.msra.mxu0 %v601
        %929 = vmatpush.msra.mxu0 %v595
        %930 = vmatpush.msra.mxu0 %v589
        %931 = vmatpush.msra.mxu0 %v583
        %932 = vmatpush.msra.mxu0 %v577
        %933 = vmatpush.msra.mxu0 %v571
        %934 = vmatmul.f32.gmra.mxu0 %v279
        %v935 = vpop.f32.mrf.mxu0
        %v936 = vadd.f32 %v913, %v935
        %937 = vmatmul.f32.gmra.mxu0 %v280
        %v938 = vpop.f32.mrf.mxu0
        %v939 = vadd.f32 %v916, %v938
        %940 = vdwg.mxu0
        %941 = vmatpush.msra.mxu0 %v374
        %942 = vmatpush.msra.mxu0 %v368
        %943 = vmatpush.msra.mxu0 %v362
        %944 = vmatpush.msra.mxu0 %v356
        %945 = vmatpush.msra.mxu0 %v350
        %946 = vmatpush.msra.mxu0 %v344
        %947 = vmatpush.msra.mxu0 %v338
        %948 = vmatpush.msra.mxu0 %v332
        %949 = vmatpush.msra.mxu0 %v326
        %950 = vmatpush.msra.mxu0 %v320
        %951 = vmatpush.msra.mxu0 %v314
        %952 = vmatpush.msra.mxu0 %v308
        %953 = vmatpush.msra.mxu0 %v302
        %954 = vmatpush.msra.mxu0 %v296
        %955 = vmatpush.msra.mxu0 %v290
        %956 = vmatpush.msra.mxu0 %v284
        %957 = vmatmul.f32.gmra.mxu0 %v273
        %v958 = vpop.f32.mrf.mxu0
        %v959 = vadd.f32 0.0, %v958
        %960 = vmatmul.f32.gmra.mxu0 %v274
        %v961 = vpop.f32.mrf.mxu0
        %v962 = vadd.f32 0.0, %v961
        %963 = vdwg.mxu0
        %964 = vmatpush.msra.mxu0 %v470
        %965 = vmatpush.msra.mxu0 %v464
        %966 = vmatpush.msra.mxu0 %v458
        %967 = vmatpush.msra.mxu0 %v452
        %968 = vmatpush.msra.mxu0 %v446
        %969 = vmatpush.msra.mxu0 %v440
        %970 = vmatpush.msra.mxu0 %v434
        %971 = vmatpush.msra.mxu0 %v428
        %972 = vmatpush.msra.mxu0 %v422
        %973 = vmatpush.msra.mxu0 %v416
        %974 = vmatpush.msra.mxu0 %v410
        %975 = vmatpush.msra.mxu0 %v404
        %976 = vmatpush.msra.mxu0 %v398
        %977 = vmatpush.msra.mxu0 %v392
        %978 = vmatpush.msra.mxu0 %v386
        %979 = vmatpush.msra.mxu0 %v380
        %980 = vmatmul.f32.gmra.mxu0 %v275
        %v981 = vpop.f32.mrf.mxu0
        %v982 = vadd.f32 %v959, %v981
        %983 = vmatmul.f32.gmra.mxu0 %v276
        %v984 = vpop.f32.mrf.mxu0
        %v985 = vadd.f32 %v962, %v984
        %986 = vdwg.mxu0
        %987 = vmatpush.msra.mxu0 %v566
        %988 = vmatpush.msra.mxu0 %v560
        %989 = vmatpush.msra.mxu0 %v554
        %990 = vmatpush.msra.mxu0 %v548
        %991 = vmatpush.msra.mxu0 %v542
        %992 = vmatpush.msra.mxu0 %v536
        %993 = vmatpush.msra.mxu0 %v530
        %994 = vmatpush.msra.mxu0 %v524
        %995 = vmatpush.msra.mxu0 %v518
        %996 = vmatpush.msra.mxu0 %v512
        %997 = vmatpush.msra.mxu0 %v506
        %998 = vmatpush.msra.mxu0 %v500
        %999 = vmatpush.msra.mxu0 %v494
        %1000 = vmatpush.msra.mxu0 %v488
        %1001 = vmatpush.msra.mxu0 %v482
        %1002 = vmatpush.msra.mxu0 %v476
        %1003 = vmatmul.f32.gmra.mxu0 %v277
        %v1004 = vpop.f32.mrf.mxu0
        %v1005 = vadd.f32 %v982, %v1004
        %1006 = vmatmul.f32.gmra.mxu0 %v278
        %v1007 = vpop.f32.mrf.mxu0
        %v1008 = vadd.f32 %v985, %v1007
        %1009 = vdwg.mxu0
        %1010 = vmatpush.msra.mxu0 %v662
        %1011 = vmatpush.msra.mxu0 %v656
        %1012 = vmatpush.msra.mxu0 %v650
        %1013 = vmatpush.msra.mxu0 %v644
        %1014 = vmatpush.msra.mxu0 %v638
        %1015 = vmatpush.msra.mxu0 %v632
        %1016 = vmatpush.msra.mxu0 %v626
        %1017 = vmatpush.msra.mxu0 %v620
        %1018 = vmatpush.msra.mxu0 %v614
        %1019 = vmatpush.msra.mxu0 %v608
        %1020 = vmatpush.msra.mxu0 %v602
        %1021 = vmatpush.msra.mxu0 %v596
        %1022 = vmatpush.msra.mxu0 %v590
        %1023 = vmatpush.msra.mxu0 %v584
        %1024 = vmatpush.msra.mxu0 %v578
        %1025 = vmatpush.msra.mxu0 %v572
        %1026 = vmatmul.f32.gmra.mxu0 %v279
        %v1027 = vpop.f32.mrf.mxu0
        %v1028 = vadd.f32 %v1005, %v1027
        %1029 = vmatmul.f32.gmra.mxu0 %v280
        %v1030 = vpop.f32.mrf.mxu0
        %v1031 = vadd.f32 %v1008, %v1030
        %1032 = vdwg.mxu0
        %1033 = vmatpush.msra.mxu0 %v375
        %1034 = vmatpush.msra.mxu0 %v369
        %1035 = vmatpush.msra.mxu0 %v363
        %1036 = vmatpush.msra.mxu0 %v357
        %1037 = vmatpush.msra.mxu0 %v351
        %1038 = vmatpush.msra.mxu0 %v345
        %1039 = vmatpush.msra.mxu0 %v339
        %1040 = vmatpush.msra.mxu0 %v333
        %1041 = vmatpush.msra.mxu0 %v327
        %1042 = vmatpush.msra.mxu0 %v321
        %1043 = vmatpush.msra.mxu0 %v315
        %1044 = vmatpush.msra.mxu0 %v309
        %1045 = vmatpush.msra.mxu0 %v303
        %1046 = vmatpush.msra.mxu0 %v297
        %1047 = vmatpush.msra.mxu0 %v291
        %1048 = vmatpush.msra.mxu0 %v285
        %1049 = vmatmul.f32.gmra.mxu0 %v273
        %v1050 = vpop.f32.mrf.mxu0
        %v1051 = vadd.f32 0.0, %v1050
        %1052 = vmatmul.f32.gmra.mxu0 %v274
        %v1053 = vpop.f32.mrf.mxu0
        %v1054 = vadd.f32 0.0, %v1053
        %1055 = vdwg.mxu0
        %1056 = vmatpush.msra.mxu0 %v471
        %1057 = vmatpush.msra.mxu0 %v465
        %1058 = vmatpush.msra.mxu0 %v459
        %1059 = vmatpush.msra.mxu0 %v453
        %1060 = vmatpush.msra.mxu0 %v447
        %1061 = vmatpush.msra.mxu0 %v441
        %1062 = vmatpush.msra.mxu0 %v435
        %1063 = vmatpush.msra.mxu0 %v429
        %1064 = vmatpush.msra.mxu0 %v423
        %1065 = vmatpush.msra.mxu0 %v417
        %1066 = vmatpush.msra.mxu0 %v411
        %1067 = vmatpush.msra.mxu0 %v405
        %1068 = vmatpush.msra.mxu0 %v399
        %1069 = vmatpush.msra.mxu0 %v393
        %1070 = vmatpush.msra.mxu0 %v387
        %1071 = vmatpush.msra.mxu0 %v381
        %1072 = vmatmul.f32.gmra.mxu0 %v275
        %v1073 = vpop.f32.mrf.mxu0
        %v1074 = vadd.f32 %v1051, %v1073
        %1075 = vmatmul.f32.gmra.mxu0 %v276
        %v1076 = vpop.f32.mrf.mxu0
        %v1077 = vadd.f32 %v1054, %v1076
        %1078 = vdwg.mxu0
        %1079 = vmatpush.msra.mxu0 %v567
        %1080 = vmatpush.msra.mxu0 %v561
        %1081 = vmatpush.msra.mxu0 %v555
        %1082 = vmatpush.msra.mxu0 %v549
        %1083 = vmatpush.msra.mxu0 %v543
        %1084 = vmatpush.msra.mxu0 %v537
        %1085 = vmatpush.msra.mxu0 %v531
        %1086 = vmatpush.msra.mxu0 %v525
        %1087 = vmatpush.msra.mxu0 %v519
        %1088 = vmatpush.msra.mxu0 %v513
        %1089 = vmatpush.msra.mxu0 %v507
        %1090 = vmatpush.msra.mxu0 %v501
        %1091 = vmatpush.msra.mxu0 %v495
        %1092 = vmatpush.msra.mxu0 %v489
        %1093 = vmatpush.msra.mxu0 %v483
        %1094 = vmatpush.msra.mxu0 %v477
        %1095 = vmatmul.f32.gmra.mxu0 %v277
        %v1096 = vpop.f32.mrf.mxu0
        %v1097 = vadd.f32 %v1074, %v1096
        %1098 = vmatmul.f32.gmra.mxu0 %v278
        %v1099 = vpop.f32.mrf.mxu0
        %v1100 = vadd.f32 %v1077, %v1099
        %1101 = vdwg.mxu0
        %1102 = vmatpush.msra.mxu0 %v663
        %1103 = vmatpush.msra.mxu0 %v657
        %1104 = vmatpush.msra.mxu0 %v651
        %1105 = vmatpush.msra.mxu0 %v645
        %1106 = vmatpush.msra.mxu0 %v639
        %1107 = vmatpush.msra.mxu0 %v633
        %1108 = vmatpush.msra.mxu0 %v627
        %1109 = vmatpush.msra.mxu0 %v621
        %1110 = vmatpush.msra.mxu0 %v615
        %1111 = vmatpush.msra.mxu0 %v609
        %1112 = vmatpush.msra.mxu0 %v603
        %1113 = vmatpush.msra.mxu0 %v597
        %1114 = vmatpush.msra.mxu0 %v591
        %1115 = vmatpush.msra.mxu0 %v585
        %1116 = vmatpush.msra.mxu0 %v579
        %1117 = vmatpush.msra.mxu0 %v573
        %1118 = vmatmul.f32.gmra.mxu0 %v279
        %v1119 = vpop.f32.mrf.mxu0
        %v1120 = vadd.f32 %v1097, %v1119
        %1121 = vmatmul.f32.gmra.mxu0 %v280
        %v1122 = vpop.f32.mrf.mxu0
        %v1123 = vadd.f32 %v1100, %v1122
        %1124 = vdwg.mxu0
        %1125 = vmatpush.msra.mxu0 %v376
        %1126 = vmatpush.msra.mxu0 %v370
        %1127 = vmatpush.msra.mxu0 %v364
        %1128 = vmatpush.msra.mxu0 %v358
        %1129 = vmatpush.msra.mxu0 %v352
        %1130 = vmatpush.msra.mxu0 %v346
        %1131 = vmatpush.msra.mxu0 %v340
        %1132 = vmatpush.msra.mxu0 %v334
        %1133 = vmatpush.msra.mxu0 %v328
        %1134 = vmatpush.msra.mxu0 %v322
        %1135 = vmatpush.msra.mxu0 %v316
        %1136 = vmatpush.msra.mxu0 %v310
        %1137 = vmatpush.msra.mxu0 %v304
        %1138 = vmatpush.msra.mxu0 %v298
        %1139 = vmatpush.msra.mxu0 %v292
        %1140 = vmatpush.msra.mxu0 %v286
        %1141 = vmatmul.f32.gmra.mxu0 %v273
        %v1142 = vpop.f32.mrf.mxu0
        %v1143 = vadd.f32 0.0, %v1142
        %1144 = vmatmul.f32.gmra.mxu0 %v274
        %v1145 = vpop.f32.mrf.mxu0
        %v1146 = vadd.f32 0.0, %v1145
        %1147 = vdwg.mxu0
        %1148 = vmatpush.msra.mxu0 %v472
        %1149 = vmatpush.msra.mxu0 %v466
        %1150 = vmatpush.msra.mxu0 %v460
        %1151 = vmatpush.msra.mxu0 %v454
        %1152 = vmatpush.msra.mxu0 %v448
        %1153 = vmatpush.msra.mxu0 %v442
        %1154 = vmatpush.msra.mxu0 %v436
        %1155 = vmatpush.msra.mxu0 %v430
        %1156 = vmatpush.msra.mxu0 %v424
        %1157 = vmatpush.msra.mxu0 %v418
        %1158 = vmatpush.msra.mxu0 %v412
        %1159 = vmatpush.msra.mxu0 %v406
        %1160 = vmatpush.msra.mxu0 %v400
        %1161 = vmatpush.msra.mxu0 %v394
        %1162 = vmatpush.msra.mxu0 %v388
        %1163 = vmatpush.msra.mxu0 %v382
        %1164 = vmatmul.f32.gmra.mxu0 %v275
        %v1165 = vpop.f32.mrf.mxu0
        %v1166 = vadd.f32 %v1143, %v1165
        %1167 = vmatmul.f32.gmra.mxu0 %v276
        %v1168 = vpop.f32.mrf.mxu0
        %v1169 = vadd.f32 %v1146, %v1168
        %1170 = vdwg.mxu0
        %1171 = vmatpush.msra.mxu0 %v568
        %1172 = vmatpush.msra.mxu0 %v562
        %1173 = vmatpush.msra.mxu0 %v556
        %1174 = vmatpush.msra.mxu0 %v550
        %1175 = vmatpush.msra.mxu0 %v544
        %1176 = vmatpush.msra.mxu0 %v538
        %1177 = vmatpush.msra.mxu0 %v532
        %1178 = vmatpush.msra.mxu0 %v526
        %1179 = vmatpush.msra.mxu0 %v520
        %1180 = vmatpush.msra.mxu0 %v514
        %1181 = vmatpush.msra.mxu0 %v508
        %1182 = vmatpush.msra.mxu0 %v502
        %1183 = vmatpush.msra.mxu0 %v496
        %1184 = vmatpush.msra.mxu0 %v490
        %1185 = vmatpush.msra.mxu0 %v484
        %1186 = vmatpush.msra.mxu0 %v478
        %1187 = vmatmul.f32.gmra.mxu0 %v277
        %v1188 = vpop.f32.mrf.mxu0
        %v1189 = vadd.f32 %v1166, %v1188
        %1190 = vmatmul.f32.gmra.mxu0 %v278
        %v1191 = vpop.f32.mrf.mxu0
        %v1192 = vadd.f32 %v1169, %v1191
        %1193 = vdwg.mxu0
        %1194 = vmatpush.msra.mxu0 %v664
        %1195 = vmatpush.msra.mxu0 %v658
        %1196 = vmatpush.msra.mxu0 %v652
        %1197 = vmatpush.msra.mxu0 %v646
        %1198 = vmatpush.msra.mxu0 %v640
        %1199 = vmatpush.msra.mxu0 %v634
        %1200 = vmatpush.msra.mxu0 %v628
        %1201 = vmatpush.msra.mxu0 %v622
        %1202 = vmatpush.msra.mxu0 %v616
        %1203 = vmatpush.msra.mxu0 %v610
        %1204 = vmatpush.msra.mxu0 %v604
        %1205 = vmatpush.msra.mxu0 %v598
        %1206 = vmatpush.msra.mxu0 %v592
        %1207 = vmatpush.msra.mxu0 %v586
        %1208 = vmatpush.msra.mxu0 %v580
        %1209 = vmatpush.msra.mxu0 %v574
        %1210 = vmatmul.f32.gmra.mxu0 %v279
        %v1211 = vpop.f32.mrf.mxu0
        %v1212 = vadd.f32 %v1189, %v1211
        %1213 = vmatmul.f32.gmra.mxu0 %v280
        %v1214 = vpop.f32.mrf.mxu0
        %v1215 = vadd.f32 %v1192, %v1214
        %1216 = vdwg.mxu0
        %v1217 = vmul.f32 %v752, %v752
        %v1218 = vmul.f32 %v844, %v844
        %v1219 = vmul.f32 %v936, %v936
        %v1220 = vmul.f32 %v755, %v755
        %v1221 = vmul.f32 %v847, %v847
        %v1222 = vmul.f32 %v939, %v939
        %v1223 = vmul.f32 %v1028, %v1028
        %v1224 = vmul.f32 %v1120, %v1120
        %v1225 = vmul.f32 %v1212, %v1212
        %v1226 = vmul.f32 %v1031, %v1031
        %v1227 = vmul.f32 %v1123, %v1123
        %v1228 = vmul.f32 %v1215, %v1215
        %v1229 = vadd.f32 %v1217, %v1223
        %v1230 = vadd.f32 %v1218, %v1224
        %v1231 = vadd.f32 %v1219, %v1225
        %v1232 = vadd.f32 %v1220, %v1226
        %v1233 = vadd.f32 %v1221, %v1227
        %v1234 = vadd.f32 %v1222, %v1228
        %v1235 = vrsqrt.pop %v1229
        %v1236 = vmul.f32 %v1235, %v1229
        %v1237 = vmul.f32 %v1236, %v1235
        %v1238 = vmul.f32 0.5, %v1237
        %v1239 = vsub.f32 1.5, %v1238
        %v1240 = vmul.f32 %v1235, %v1239
        %v1241 = vmul.f32 %v1229, %v1240
        %vm1242 = vcmp.eq.f32.partialorder %v1229, inf
        %v1243 = vsel %vm1242, %v1229, %v1241
        %vm1244 = vcmp.eq.f32.partialorder %v1229, 0.0
        %v1245 = vand.u32 %v1229, 2147483648
        %v1246 = vsel %vm1244, %v1245, %v1243
        %v1247 = vrsqrt.pop %v1230
        %v1248 = vmul.f32 %v1247, %v1230
        %v1249 = vmul.f32 %v1248, %v1247
        %v1250 = vmul.f32 0.5, %v1249
        %v1251 = vsub.f32 1.5, %v1250
        %v1252 = vmul.f32 %v1247, %v1251
        %v1253 = vmul.f32 %v1230, %v1252
        %vm1254 = vcmp.eq.f32.partialorder %v1230, inf
        %v1255 = vsel %vm1254, %v1230, %v1253
        %vm1256 = vcmp.eq.f32.partialorder %v1230, 0.0
        %v1257 = vand.u32 %v1230, 2147483648
        %v1258 = vsel %vm1256, %v1257, %v1255
        %v1259 = vrsqrt.pop %v1231
        %v1260 = vmul.f32 %v1259, %v1231
        %v1261 = vmul.f32 %v1260, %v1259
        %v1262 = vmul.f32 0.5, %v1261
        %v1263 = vsub.f32 1.5, %v1262
        %v1264 = vmul.f32 %v1259, %v1263
        %v1265 = vmul.f32 %v1231, %v1264
        %vm1266 = vcmp.eq.f32.partialorder %v1231, inf
        %v1267 = vsel %vm1266, %v1231, %v1265
        %vm1268 = vcmp.eq.f32.partialorder %v1231, 0.0
        %v1269 = vand.u32 %v1231, 2147483648
        %v1270 = vsel %vm1268, %v1269, %v1267
        %v1271 = vrsqrt.pop %v1232
        %v1272 = vmul.f32 %v1271, %v1232
        %v1273 = vmul.f32 %v1272, %v1271
        %v1274 = vmul.f32 0.5, %v1273
        %v1275 = vsub.f32 1.5, %v1274
        %v1276 = vmul.f32 %v1271, %v1275
        %v1277 = vmul.f32 %v1232, %v1276
        %vm1278 = vcmp.eq.f32.partialorder %v1232, inf
        %v1279 = vsel %vm1278, %v1232, %v1277
        %vm1280 = vcmp.eq.f32.partialorder %v1232, 0.0
        %v1281 = vand.u32 %v1232, 2147483648
        %v1282 = vsel %vm1280, %v1281, %v1279
        %v1283 = vrsqrt.pop %v1233
        %v1284 = vmul.f32 %v1283, %v1233
        %v1285 = vmul.f32 %v1284, %v1283
        %v1286 = vmul.f32 0.5, %v1285
        %v1287 = vsub.f32 1.5, %v1286
        %v1288 = vmul.f32 %v1283, %v1287
        %v1289 = vmul.f32 %v1233, %v1288
        %vm1290 = vcmp.eq.f32.partialorder %v1233, inf
        %v1291 = vsel %vm1290, %v1233, %v1289
        %vm1292 = vcmp.eq.f32.partialorder %v1233, 0.0
        %v1293 = vand.u32 %v1233, 2147483648
        %v1294 = vsel %vm1292, %v1293, %v1291
        %v1295 = vrsqrt.pop %v1234
        %v1296 = vmul.f32 %v1295, %v1234
        %v1297 = vmul.f32 %v1296, %v1295
        %v1298 = vmul.f32 0.5, %v1297
        %v1299 = vsub.f32 1.5, %v1298
        %v1300 = vmul.f32 %v1295, %v1299
        %v1301 = vmul.f32 %v1234, %v1300
        %vm1302 = vcmp.eq.f32.partialorder %v1234, inf
        %v1303 = vsel %vm1302, %v1234, %v1301
        %vm1304 = vcmp.eq.f32.partialorder %v1234, 0.0
        %v1305 = vand.u32 %v1234, 2147483648
        %v1306 = vsel %vm1304, %v1305, %v1303
        %vm1307 = vcmp.gt.f32.partialorder %v1246, 0.0
        %vm1308 = vcmp.gt.f32.partialorder %v1258, 0.0
        %vm1309 = vcmp.gt.f32.partialorder %v1270, 0.0
        %vm1310 = vcmp.gt.f32.partialorder %v1282, 0.0
        %vm1311 = vcmp.gt.f32.partialorder %v1294, 0.0
        %vm1312 = vcmp.gt.f32.partialorder %v1306, 0.0
        %v1313 = vrcp.pop %v1246
        %v1314 = vrcp.pop %v1258
        %v1315 = vrcp.pop %v1270
        %v1316 = vrcp.pop %v1282
        %v1317 = vrcp.pop %v1294
        %v1318 = vrcp.pop %v1306
        %v1319 = vsel %vm1307, %v1313, 0.0
        %v1320 = vsel %vm1308, %v1314, 0.0
        %v1321 = vsel %vm1309, %v1315, 0.0
        %v1322 = vsel %vm1310, %v1316, 0.0
        %v1323 = vsel %vm1311, %v1317, 0.0
        %v1324 = vsel %vm1312, %v1318, 0.0
        %v1325 = vld [vmem:[#allocation7] sm:$0x7]
        %v1327 = vperm.slane %v1325, 0
        %v1328 = vperm.slane %v1325, 1
        %v1329 = vperm.slane %v1325, 2
        %v1333 = vsub.f32 %v1246, %v1327
        %v1334 = vsub.f32 %v1258, %v1328
        %v1335 = vsub.f32 %v1270, %v1329
        %v1336 = vsub.f32 %v1282, %v1327
        %v1337 = vsub.f32 %v1294, %v1328
        %v1338 = vsub.f32 %v1306, %v1329
        %v1339 = vmax.f32 %v1333, 0.0
        %v1340 = vmax.f32 %v1334, 0.0
        %v1341 = vmax.f32 %v1335, 0.0
        %v1342 = vmax.f32 %v1336, 0.0
        %v1343 = vmax.f32 %v1337, 0.0
        %v1344 = vmax.f32 %v1338, 0.0
        %v1345 = vmul.f32 %v1339, %v1319
        %v1346 = vmul.f32 %v1340, %v1320
        %v1347 = vmul.f32 %v1341, %v1321
        %v1348 = vmul.f32 %v1342, %v1322
        %v1349 = vmul.f32 %v1343, %v1323
        %v1350 = vmul.f32 %v1344, %v1324
        %v1351 = vmul.f32 %v1345, %v752
        %v1352 = vmul.f32 %v1346, %v844
        %v1353 = vmul.f32 %v1347, %v936
        %v1354 = vmul.f32 %v1345, %v1028
        %v1355 = vmul.f32 %v1346, %v1120
        %v1356 = vmul.f32 %v1347, %v1212
        %v1357 = vmul.f32 %v1348, %v755
        %v1358 = vmul.f32 %v1349, %v847
        %v1359 = vmul.f32 %v1350, %v939
        %v1360 = vmul.f32 %v1348, %v1031
        %v1361 = vmul.f32 %v1349, %v1123
        %v1362 = vmul.f32 %v1350, %v1215
        %v1363 = vld [vmem:[#allocation5] sm:$0xff]
        %v1364 = vld [vmem:[#allocation5 + $0x8] sm:$0xff]
        %v1365 = vld [vmem:[#allocation5 + $0x10] sm:$0xff]
        %v1366 = vld [vmem:[#allocation5 + $0x18] sm:$0xff]
        %v1367 = vld [vmem:[#allocation5 + $0x20] sm:$0xff]
        %v1368 = vld [vmem:[#allocation5 + $0x28] sm:$0xff]
        %v1369 = vld [vmem:[#allocation5 + $0x30] sm:$0xff]
        %v1370 = vld [vmem:[#allocation5 + $0x38] sm:$0xff]
        %v1371 = vld [vmem:[#allocation5 + $0x40] sm:$0xff]
        %v1372 = vld [vmem:[#allocation5 + $0x48] sm:$0xff]
        %v1373 = vld [vmem:[#allocation5 + $0x50] sm:$0xff]
        %v1374 = vld [vmem:[#allocation5 + $0x58] sm:$0xff]
        %v1375 = vld [vmem:[#allocation5 + $0x60] sm:$0xff]
        %v1376 = vld [vmem:[#allocation5 + $0x68] sm:$0xff]
        %v1377 = vld [vmem:[#allocation5 + $0x70] sm:$0xff]
        %v1378 = vld [vmem:[#allocation5 + $0x78] sm:$0xff]
        %v1379 = vld [vmem:[#allocation5 + $0x80] sm:$0xff]
        %v1380 = vld [vmem:[#allocation5 + $0x88] sm:$0xff]
        %v1381 = vld [vmem:[#allocation5 + $0x90] sm:$0xff]
        %v1382 = vld [vmem:[#allocation5 + $0x98] sm:$0xff]
        %v1383 = vld [vmem:[#allocation5 + $0xa0] sm:$0xff]
        %v1384 = vld [vmem:[#allocation5 + $0xa8] sm:$0xff]
        %v1385 = vld [vmem:[#allocation5 + $0xb0] sm:$0xff]
        %v1386 = vld [vmem:[#allocation5 + $0xb8] sm:$0xff]
        %v1387 = vld [vmem:[#allocation5 + $0xc0] sm:$0xff]
        %v1388 = vld [vmem:[#allocation5 + $0xc8] sm:$0xff]
        %v1389 = vld [vmem:[#allocation5 + $0xd0] sm:$0xff]
        %v1390 = vld [vmem:[#allocation5 + $0xd8] sm:$0xff]
        %v1391 = vld [vmem:[#allocation5 + $0xe0] sm:$0xff]
        %v1392 = vld [vmem:[#allocation5 + $0xe8] sm:$0xff]
        %v1393 = vld [vmem:[#allocation5 + $0xf0] sm:$0xff]
        %v1394 = vld [vmem:[#allocation5 + $0xf8] sm:$0xff]
        %v1395 = vld [vmem:[#allocation5 + $0x100] sm:$0xff]
        %v1396 = vld [vmem:[#allocation5 + $0x108] sm:$0xff]
        %v1397 = vld [vmem:[#allocation5 + $0x110] sm:$0xff]
        %v1398 = vld [vmem:[#allocation5 + $0x118] sm:$0xff]
        %v1399 = vld [vmem:[#allocation5 + $0x120] sm:$0xff]
        %v1400 = vld [vmem:[#allocation5 + $0x128] sm:$0xff]
        %v1401 = vld [vmem:[#allocation5 + $0x130] sm:$0xff]
        %v1402 = vld [vmem:[#allocation5 + $0x138] sm:$0xff]
        %v1403 = vld [vmem:[#allocation5 + $0x140] sm:$0xff]
        %v1404 = vld [vmem:[#allocation5 + $0x148] sm:$0xff]
        %v1405 = vld [vmem:[#allocation5 + $0x150] sm:$0xff]
        %v1406 = vld [vmem:[#allocation5 + $0x158] sm:$0xff]
        %v1407 = vld [vmem:[#allocation5 + $0x160] sm:$0xff]
        %v1408 = vld [vmem:[#allocation5 + $0x168] sm:$0xff]
        %v1409 = vld [vmem:[#allocation5 + $0x170] sm:$0xff]
        %v1410 = vld [vmem:[#allocation5 + $0x178] sm:$0xff]
        %v1411 = vld [vmem:[#allocation5 + $0x180] sm:$0xff]
        %v1412 = vld [vmem:[#allocation5 + $0x188] sm:$0xff]
        %v1413 = vld [vmem:[#allocation5 + $0x190] sm:$0xff]
        %v1414 = vld [vmem:[#allocation5 + $0x198] sm:$0xff]
        %v1415 = vld [vmem:[#allocation5 + $0x1a0] sm:$0xff]
        %v1416 = vld [vmem:[#allocation5 + $0x1a8] sm:$0xff]
        %v1417 = vld [vmem:[#allocation5 + $0x1b0] sm:$0xff]
        %v1418 = vld [vmem:[#allocation5 + $0x1b8] sm:$0xff]
        %v1419 = vld [vmem:[#allocation5 + $0x1c0] sm:$0xff]
        %v1420 = vld [vmem:[#allocation5 + $0x1c8] sm:$0xff]
        %v1421 = vld [vmem:[#allocation5 + $0x1d0] sm:$0xff]
        %v1422 = vld [vmem:[#allocation5 + $0x1d8] sm:$0xff]
        %v1423 = vld [vmem:[#allocation5 + $0x1e0] sm:$0xff]
        %v1424 = vld [vmem:[#allocation5 + $0x1e8] sm:$0xff]
        %v1425 = vld [vmem:[#allocation5 + $0x1f0] sm:$0xff]
        %v1426 = vld [vmem:[#allocation5 + $0x1f8] sm:$0xff]
        %v1427 = vld [vmem:[#allocation5 + $0x200] sm:$0xff]
        %v1428 = vld [vmem:[#allocation5 + $0x208] sm:$0xff]
        %v1429 = vld [vmem:[#allocation5 + $0x210] sm:$0xff]
        %v1430 = vld [vmem:[#allocation5 + $0x218] sm:$0xff]
        %v1431 = vld [vmem:[#allocation5 + $0x220] sm:$0xff]
        %v1432 = vld [vmem:[#allocation5 + $0x228] sm:$0xff]
        %v1433 = vld [vmem:[#allocation5 + $0x230] sm:$0xff]
        %v1434 = vld [vmem:[#allocation5 + $0x238] sm:$0xff]
        %v1435 = vld [vmem:[#allocation5 + $0x240] sm:$0xff]
        %v1436 = vld [vmem:[#allocation5 + $0x248] sm:$0xff]
        %v1437 = vld [vmem:[#allocation5 + $0x250] sm:$0xff]
        %v1438 = vld [vmem:[#allocation5 + $0x258] sm:$0xff]
        %v1439 = vld [vmem:[#allocation5 + $0x260] sm:$0xff]
        %v1440 = vld [vmem:[#allocation5 + $0x268] sm:$0xff]
        %v1441 = vld [vmem:[#allocation5 + $0x270] sm:$0xff]
        %v1442 = vld [vmem:[#allocation5 + $0x278] sm:$0xff]
        %v1443 = vld [vmem:[#allocation5 + $0x280] sm:$0xff]
        %v1444 = vld [vmem:[#allocation5 + $0x288] sm:$0xff]
        %v1445 = vld [vmem:[#allocation5 + $0x290] sm:$0xff]
        %v1446 = vld [vmem:[#allocation5 + $0x298] sm:$0xff]
        %v1447 = vld [vmem:[#allocation5 + $0x2a0] sm:$0xff]
        %v1448 = vld [vmem:[#allocation5 + $0x2a8] sm:$0xff]
        %v1449 = vld [vmem:[#allocation5 + $0x2b0] sm:$0xff]
        %v1450 = vld [vmem:[#allocation5 + $0x2b8] sm:$0xff]
        %v1451 = vld [vmem:[#allocation5 + $0x2c0] sm:$0xff]
        %v1452 = vld [vmem:[#allocation5 + $0x2c8] sm:$0xff]
        %v1453 = vld [vmem:[#allocation5 + $0x2d0] sm:$0xff]
        %v1454 = vld [vmem:[#allocation5 + $0x2d8] sm:$0xff]
        %v1455 = vld [vmem:[#allocation5 + $0x2e0] sm:$0xff]
        %v1456 = vld [vmem:[#allocation5 + $0x2e8] sm:$0xff]
        %v1457 = vld [vmem:[#allocation5 + $0x2f0] sm:$0xff]
        %v1458 = vld [vmem:[#allocation5 + $0x2f8] sm:$0xff]
        %v1459 = vld [vmem:[#allocation5 + $0x300] sm:$0xff]
        %v1460 = vld [vmem:[#allocation5 + $0x308] sm:$0xff]
        %v1461 = vld [vmem:[#allocation5 + $0x310] sm:$0xff]
        %v1462 = vld [vmem:[#allocation5 + $0x318] sm:$0xff]
        %v1463 = vld [vmem:[#allocation5 + $0x320] sm:$0xff]
        %v1464 = vld [vmem:[#allocation5 + $0x328] sm:$0xff]
        %v1465 = vld [vmem:[#allocation5 + $0x330] sm:$0xff]
        %v1466 = vld [vmem:[#allocation5 + $0x338] sm:$0xff]
        %v1467 = vld [vmem:[#allocation5 + $0x340] sm:$0xff]
        %v1468 = vld [vmem:[#allocation5 + $0x348] sm:$0xff]
        %v1469 = vld [vmem:[#allocation5 + $0x350] sm:$0xff]
        %v1470 = vld [vmem:[#allocation5 + $0x358] sm:$0xff]
        %v1471 = vld [vmem:[#allocation5 + $0x360] sm:$0xff]
        %v1472 = vld [vmem:[#allocation5 + $0x368] sm:$0xff]
        %v1473 = vld [vmem:[#allocation5 + $0x370] sm:$0xff]
        %v1474 = vld [vmem:[#allocation5 + $0x378] sm:$0xff]
        %v1475 = vld [vmem:[#allocation5 + $0x380] sm:$0xff]
        %v1476 = vld [vmem:[#allocation5 + $0x388] sm:$0xff]
        %v1477 = vld [vmem:[#allocation5 + $0x390] sm:$0xff]
        %v1478 = vld [vmem:[#allocation5 + $0x398] sm:$0xff]
        %v1479 = vld [vmem:[#allocation5 + $0x3a0] sm:$0xff]
        %v1480 = vld [vmem:[#allocation5 + $0x3a8] sm:$0xff]
        %v1481 = vld [vmem:[#allocation5 + $0x3b0] sm:$0xff]
        %v1482 = vld [vmem:[#allocation5 + $0x3b8] sm:$0xff]
        %v1483 = vld [vmem:[#allocation5 + $0x3c0] sm:$0xff]
        %v1484 = vld [vmem:[#allocation5 + $0x3c8] sm:$0xff]
        %v1485 = vld [vmem:[#allocation5 + $0x3d0] sm:$0xff]
        %v1486 = vld [vmem:[#allocation5 + $0x3d8] sm:$0xff]
        %v1487 = vld [vmem:[#allocation5 + $0x3e0] sm:$0xff]
        %v1488 = vld [vmem:[#allocation5 + $0x3e8] sm:$0xff]
        %v1489 = vld [vmem:[#allocation5 + $0x3f0] sm:$0xff]
        %v1490 = vld [vmem:[#allocation5 + $0x3f8] sm:$0xff]
        %v1491 = vld [vmem:[#allocation5 + $0x400] sm:$0xff]
        %v1492 = vld [vmem:[#allocation5 + $0x408] sm:$0xff]
        %v1493 = vld [vmem:[#allocation5 + $0x410] sm:$0xff]
        %v1494 = vld [vmem:[#allocation5 + $0x418] sm:$0xff]
        %v1495 = vld [vmem:[#allocation5 + $0x420] sm:$0xff]
        %v1496 = vld [vmem:[#allocation5 + $0x428] sm:$0xff]
        %v1497 = vld [vmem:[#allocation5 + $0x430] sm:$0xff]
        %v1498 = vld [vmem:[#allocation5 + $0x438] sm:$0xff]
        %v1499 = vld [vmem:[#allocation5 + $0x440] sm:$0xff]
        %v1500 = vld [vmem:[#allocation5 + $0x448] sm:$0xff]
        %v1501 = vld [vmem:[#allocation5 + $0x450] sm:$0xff]
        %v1502 = vld [vmem:[#allocation5 + $0x458] sm:$0xff]
        %v1503 = vld [vmem:[#allocation5 + $0x460] sm:$0xff]
        %v1504 = vld [vmem:[#allocation5 + $0x468] sm:$0xff]
        %v1505 = vld [vmem:[#allocation5 + $0x470] sm:$0xff]
        %v1506 = vld [vmem:[#allocation5 + $0x478] sm:$0xff]
        %v1507 = vld [vmem:[#allocation5 + $0x480] sm:$0xff]
        %v1508 = vld [vmem:[#allocation5 + $0x488] sm:$0xff]
        %v1509 = vld [vmem:[#allocation5 + $0x490] sm:$0xff]
        %v1510 = vld [vmem:[#allocation5 + $0x498] sm:$0xff]
        %v1511 = vld [vmem:[#allocation5 + $0x4a0] sm:$0xff]
        %v1512 = vld [vmem:[#allocation5 + $0x4a8] sm:$0xff]
        %v1513 = vld [vmem:[#allocation5 + $0x4b0] sm:$0xff]
        %v1514 = vld [vmem:[#allocation5 + $0x4b8] sm:$0xff]
        %v1515 = vld [vmem:[#allocation5 + $0x4c0] sm:$0xff]
        %v1516 = vld [vmem:[#allocation5 + $0x4c8] sm:$0xff]
        %v1517 = vld [vmem:[#allocation5 + $0x4d0] sm:$0xff]
        %v1518 = vld [vmem:[#allocation5 + $0x4d8] sm:$0xff]
        %v1519 = vld [vmem:[#allocation5 + $0x4e0] sm:$0xff]
        %v1520 = vld [vmem:[#allocation5 + $0x4e8] sm:$0xff]
        %v1521 = vld [vmem:[#allocation5 + $0x4f0] sm:$0xff]
        %v1522 = vld [vmem:[#allocation5 + $0x4f8] sm:$0xff]
        %v1523 = vld [vmem:[#allocation5 + $0x500] sm:$0xff]
        %v1524 = vld [vmem:[#allocation5 + $0x508] sm:$0xff]
        %v1525 = vld [vmem:[#allocation5 + $0x510] sm:$0xff]
        %v1526 = vld [vmem:[#allocation5 + $0x518] sm:$0xff]
        %v1527 = vld [vmem:[#allocation5 + $0x520] sm:$0xff]
        %v1528 = vld [vmem:[#allocation5 + $0x528] sm:$0xff]
        %v1529 = vld [vmem:[#allocation5 + $0x530] sm:$0xff]
        %v1530 = vld [vmem:[#allocation5 + $0x538] sm:$0xff]
        %v1531 = vld [vmem:[#allocation5 + $0x540] sm:$0xff]
        %v1532 = vld [vmem:[#allocation5 + $0x548] sm:$0xff]
        %v1533 = vld [vmem:[#allocation5 + $0x550] sm:$0xff]
        %v1534 = vld [vmem:[#allocation5 + $0x558] sm:$0xff]
        %v1535 = vld [vmem:[#allocation5 + $0x560] sm:$0xff]
        %v1536 = vld [vmem:[#allocation5 + $0x568] sm:$0xff]
        %v1537 = vld [vmem:[#allocation5 + $0x570] sm:$0xff]
        %v1538 = vld [vmem:[#allocation5 + $0x578] sm:$0xff]
        %v1539 = vld [vmem:[#allocation5 + $0x580] sm:$0xff]
        %v1540 = vld [vmem:[#allocation5 + $0x588] sm:$0xff]
        %v1541 = vld [vmem:[#allocation5 + $0x590] sm:$0xff]
        %v1542 = vld [vmem:[#allocation5 + $0x598] sm:$0xff]
        %v1543 = vld [vmem:[#allocation5 + $0x5a0] sm:$0xff]
        %v1544 = vld [vmem:[#allocation5 + $0x5a8] sm:$0xff]
        %v1545 = vld [vmem:[#allocation5 + $0x5b0] sm:$0xff]
        %v1546 = vld [vmem:[#allocation5 + $0x5b8] sm:$0xff]
        %v1547 = vld [vmem:[#allocation5 + $0x5c0] sm:$0xff]
        %v1548 = vld [vmem:[#allocation5 + $0x5c8] sm:$0xff]
        %v1549 = vld [vmem:[#allocation5 + $0x5d0] sm:$0xff]
        %v1550 = vld [vmem:[#allocation5 + $0x5d8] sm:$0xff]
        %v1551 = vld [vmem:[#allocation5 + $0x5e0] sm:$0xff]
        %v1552 = vld [vmem:[#allocation5 + $0x5e8] sm:$0xff]
        %v1553 = vld [vmem:[#allocation5 + $0x5f0] sm:$0xff]
        %v1554 = vld [vmem:[#allocation5 + $0x5f8] sm:$0xff]
        %v1555 = vld [vmem:[#allocation5 + $0x600] sm:$0xff]
        %v1556 = vld [vmem:[#allocation5 + $0x608] sm:$0xff]
        %v1557 = vld [vmem:[#allocation5 + $0x610] sm:$0xff]
        %v1558 = vld [vmem:[#allocation5 + $0x618] sm:$0xff]
        %v1559 = vld [vmem:[#allocation5 + $0x620] sm:$0xff]
        %v1560 = vld [vmem:[#allocation5 + $0x628] sm:$0xff]
        %v1561 = vld [vmem:[#allocation5 + $0x630] sm:$0xff]
        %v1562 = vld [vmem:[#allocation5 + $0x638] sm:$0xff]
        %v1563 = vld [vmem:[#allocation5 + $0x640] sm:$0xff]
        %v1564 = vld [vmem:[#allocation5 + $0x648] sm:$0xff]
        %v1565 = vld [vmem:[#allocation5 + $0x650] sm:$0xff]
        %v1566 = vld [vmem:[#allocation5 + $0x658] sm:$0xff]
        %v1567 = vld [vmem:[#allocation5 + $0x660] sm:$0xff]
        %v1568 = vld [vmem:[#allocation5 + $0x668] sm:$0xff]
        %v1569 = vld [vmem:[#allocation5 + $0x670] sm:$0xff]
        %v1570 = vld [vmem:[#allocation5 + $0x678] sm:$0xff]
        %v1571 = vld [vmem:[#allocation5 + $0x680] sm:$0xff]
        %v1572 = vld [vmem:[#allocation5 + $0x688] sm:$0xff]
        %v1573 = vld [vmem:[#allocation5 + $0x690] sm:$0xff]
        %v1574 = vld [vmem:[#allocation5 + $0x698] sm:$0xff]
        %v1575 = vld [vmem:[#allocation5 + $0x6a0] sm:$0xff]
        %v1576 = vld [vmem:[#allocation5 + $0x6a8] sm:$0xff]
        %v1577 = vld [vmem:[#allocation5 + $0x6b0] sm:$0xff]
        %v1578 = vld [vmem:[#allocation5 + $0x6b8] sm:$0xff]
        %v1579 = vld [vmem:[#allocation5 + $0x6c0] sm:$0xff]
        %v1580 = vld [vmem:[#allocation5 + $0x6c8] sm:$0xff]
        %v1581 = vld [vmem:[#allocation5 + $0x6d0] sm:$0xff]
        %v1582 = vld [vmem:[#allocation5 + $0x6d8] sm:$0xff]
        %v1583 = vld [vmem:[#allocation5 + $0x6e0] sm:$0xff]
        %v1584 = vld [vmem:[#allocation5 + $0x6e8] sm:$0xff]
        %v1585 = vld [vmem:[#allocation5 + $0x6f0] sm:$0xff]
        %v1586 = vld [vmem:[#allocation5 + $0x6f8] sm:$0xff]
        %v1587 = vld [vmem:[#allocation5 + $0x700] sm:$0xff]
        %v1588 = vld [vmem:[#allocation5 + $0x708] sm:$0xff]
        %v1589 = vld [vmem:[#allocation5 + $0x710] sm:$0xff]
        %v1590 = vld [vmem:[#allocation5 + $0x718] sm:$0xff]
        %v1591 = vld [vmem:[#allocation5 + $0x720] sm:$0xff]
        %v1592 = vld [vmem:[#allocation5 + $0x728] sm:$0xff]
        %v1593 = vld [vmem:[#allocation5 + $0x730] sm:$0xff]
        %v1594 = vld [vmem:[#allocation5 + $0x738] sm:$0xff]
        %v1595 = vld [vmem:[#allocation5 + $0x740] sm:$0xff]
        %v1596 = vld [vmem:[#allocation5 + $0x748] sm:$0xff]
        %v1597 = vld [vmem:[#allocation5 + $0x750] sm:$0xff]
        %v1598 = vld [vmem:[#allocation5 + $0x758] sm:$0xff]
        %v1599 = vld [vmem:[#allocation5 + $0x760] sm:$0xff]
        %v1600 = vld [vmem:[#allocation5 + $0x768] sm:$0xff]
        %v1601 = vld [vmem:[#allocation5 + $0x770] sm:$0xff]
        %v1602 = vld [vmem:[#allocation5 + $0x778] sm:$0xff]
        %v1603 = vld [vmem:[#allocation5 + $0x780] sm:$0xff]
        %v1604 = vld [vmem:[#allocation5 + $0x788] sm:$0xff]
        %v1605 = vld [vmem:[#allocation5 + $0x790] sm:$0xff]
        %v1606 = vld [vmem:[#allocation5 + $0x798] sm:$0xff]
        %v1607 = vld [vmem:[#allocation5 + $0x7a0] sm:$0xff]
        %v1608 = vld [vmem:[#allocation5 + $0x7a8] sm:$0xff]
        %v1609 = vld [vmem:[#allocation5 + $0x7b0] sm:$0xff]
        %v1610 = vld [vmem:[#allocation5 + $0x7b8] sm:$0xff]
        %v1611 = vld [vmem:[#allocation5 + $0x7c0] sm:$0xff]
        %v1612 = vld [vmem:[#allocation5 + $0x7c8] sm:$0xff]
        %v1613 = vld [vmem:[#allocation5 + $0x7d0] sm:$0xff]
        %v1614 = vld [vmem:[#allocation5 + $0x7d8] sm:$0xff]
        %v1615 = vld [vmem:[#allocation5 + $0x7e0] sm:$0xff]
        %v1616 = vld [vmem:[#allocation5 + $0x7e8] sm:$0xff]
        %v1617 = vld [vmem:[#allocation5 + $0x7f0] sm:$0xff]
        %v1618 = vld [vmem:[#allocation5 + $0x7f8] sm:$0xff]
        %v1619 = vld [vmem:[#allocation5 + $0x800] sm:$0xff]
        %v1620 = vld [vmem:[#allocation5 + $0x808] sm:$0xff]
        %v1621 = vld [vmem:[#allocation5 + $0x810] sm:$0xff]
        %v1622 = vld [vmem:[#allocation5 + $0x818] sm:$0xff]
        %v1623 = vld [vmem:[#allocation5 + $0x820] sm:$0xff]
        %v1624 = vld [vmem:[#allocation5 + $0x828] sm:$0xff]
        %v1625 = vld [vmem:[#allocation5 + $0x830] sm:$0xff]
        %v1626 = vld [vmem:[#allocation5 + $0x838] sm:$0xff]
        %v1627 = vld [vmem:[#allocation5 + $0x840] sm:$0xff]
        %v1628 = vld [vmem:[#allocation5 + $0x848] sm:$0xff]
        %v1629 = vld [vmem:[#allocation5 + $0x850] sm:$0xff]
        %v1630 = vld [vmem:[#allocation5 + $0x858] sm:$0xff]
        %v1631 = vld [vmem:[#allocation5 + $0x860] sm:$0xff]
        %v1632 = vld [vmem:[#allocation5 + $0x868] sm:$0xff]
        %v1633 = vld [vmem:[#allocation5 + $0x870] sm:$0xff]
        %v1634 = vld [vmem:[#allocation5 + $0x878] sm:$0xff]
        %v1635 = vld [vmem:[#allocation5 + $0x880] sm:$0xff]
        %v1636 = vld [vmem:[#allocation5 + $0x888] sm:$0xff]
        %v1637 = vld [vmem:[#allocation5 + $0x890] sm:$0xff]
        %v1638 = vld [vmem:[#allocation5 + $0x898] sm:$0xff]
        %v1639 = vld [vmem:[#allocation5 + $0x8a0] sm:$0xff]
        %v1640 = vld [vmem:[#allocation5 + $0x8a8] sm:$0xff]
        %v1641 = vld [vmem:[#allocation5 + $0x8b0] sm:$0xff]
        %v1642 = vld [vmem:[#allocation5 + $0x8b8] sm:$0xff]
        %v1643 = vld [vmem:[#allocation5 + $0x8c0] sm:$0xff]
        %v1644 = vld [vmem:[#allocation5 + $0x8c8] sm:$0xff]
        %v1645 = vld [vmem:[#allocation5 + $0x8d0] sm:$0xff]
        %v1646 = vld [vmem:[#allocation5 + $0x8d8] sm:$0xff]
        %v1647 = vld [vmem:[#allocation5 + $0x8e0] sm:$0xff]
        %v1648 = vld [vmem:[#allocation5 + $0x8e8] sm:$0xff]
        %v1649 = vld [vmem:[#allocation5 + $0x8f0] sm:$0xff]
        %v1650 = vld [vmem:[#allocation5 + $0x8f8] sm:$0xff]
        %v1651 = vld [vmem:[#allocation5 + $0x900] sm:$0xff]
        %v1652 = vld [vmem:[#allocation5 + $0x908] sm:$0xff]
        %v1653 = vld [vmem:[#allocation5 + $0x910] sm:$0xff]
        %v1654 = vld [vmem:[#allocation5 + $0x918] sm:$0xff]
        %v1655 = vld [vmem:[#allocation5 + $0x920] sm:$0xff]
        %v1656 = vld [vmem:[#allocation5 + $0x928] sm:$0xff]
        %v1657 = vld [vmem:[#allocation5 + $0x930] sm:$0xff]
        %v1658 = vld [vmem:[#allocation5 + $0x938] sm:$0xff]
        %v1659 = vld [vmem:[#allocation5 + $0x940] sm:$0xff]
        %v1660 = vld [vmem:[#allocation5 + $0x948] sm:$0xff]
        %v1661 = vld [vmem:[#allocation5 + $0x950] sm:$0xff]
        %v1662 = vld [vmem:[#allocation5 + $0x958] sm:$0xff]
        %v1663 = vld [vmem:[#allocation5 + $0x960] sm:$0xff]
        %v1664 = vld [vmem:[#allocation5 + $0x968] sm:$0xff]
        %v1665 = vld [vmem:[#allocation5 + $0x970] sm:$0xff]
        %v1666 = vld [vmem:[#allocation5 + $0x978] sm:$0xff]
        %v1667 = vld [vmem:[#allocation5 + $0x980] sm:$0xff]
        %v1668 = vld [vmem:[#allocation5 + $0x988] sm:$0xff]
        %v1669 = vld [vmem:[#allocation5 + $0x990] sm:$0xff]
        %v1670 = vld [vmem:[#allocation5 + $0x998] sm:$0xff]
        %v1671 = vld [vmem:[#allocation5 + $0x9a0] sm:$0xff]
        %v1672 = vld [vmem:[#allocation5 + $0x9a8] sm:$0xff]
        %v1673 = vld [vmem:[#allocation5 + $0x9b0] sm:$0xff]
        %v1674 = vld [vmem:[#allocation5 + $0x9b8] sm:$0xff]
        %v1675 = vld [vmem:[#allocation5 + $0x9c0] sm:$0xff]
        %v1676 = vld [vmem:[#allocation5 + $0x9c8] sm:$0xff]
        %v1677 = vld [vmem:[#allocation5 + $0x9d0] sm:$0xff]
        %v1678 = vld [vmem:[#allocation5 + $0x9d8] sm:$0xff]
        %v1679 = vld [vmem:[#allocation5 + $0x9e0] sm:$0xff]
        %v1680 = vld [vmem:[#allocation5 + $0x9e8] sm:$0xff]
        %v1681 = vld [vmem:[#allocation5 + $0x9f0] sm:$0xff]
        %v1682 = vld [vmem:[#allocation5 + $0x9f8] sm:$0xff]
        %v1683 = vld [vmem:[#allocation5 + $0xa00] sm:$0xff]
        %v1684 = vld [vmem:[#allocation5 + $0xa08] sm:$0xff]
        %v1685 = vld [vmem:[#allocation5 + $0xa10] sm:$0xff]
        %v1686 = vld [vmem:[#allocation5 + $0xa18] sm:$0xff]
        %v1687 = vld [vmem:[#allocation5 + $0xa20] sm:$0xff]
        %v1688 = vld [vmem:[#allocation5 + $0xa28] sm:$0xff]
        %v1689 = vld [vmem:[#allocation5 + $0xa30] sm:$0xff]
        %v1690 = vld [vmem:[#allocation5 + $0xa38] sm:$0xff]
        %v1691 = vld [vmem:[#allocation5 + $0xa40] sm:$0xff]
        %v1692 = vld [vmem:[#allocation5 + $0xa48] sm:$0xff]
        %v1693 = vld [vmem:[#allocation5 + $0xa50] sm:$0xff]
        %v1694 = vld [vmem:[#allocation5 + $0xa58] sm:$0xff]
        %v1695 = vld [vmem:[#allocation5 + $0xa60] sm:$0xff]
        %v1696 = vld [vmem:[#allocation5 + $0xa68] sm:$0xff]
        %v1697 = vld [vmem:[#allocation5 + $0xa70] sm:$0xff]
        %v1698 = vld [vmem:[#allocation5 + $0xa78] sm:$0xff]
        %v1699 = vld [vmem:[#allocation5 + $0xa80] sm:$0xff]
        %v1700 = vld [vmem:[#allocation5 + $0xa88] sm:$0xff]
        %v1701 = vld [vmem:[#allocation5 + $0xa90] sm:$0xff]
        %v1702 = vld [vmem:[#allocation5 + $0xa98] sm:$0xff]
        %v1703 = vld [vmem:[#allocation5 + $0xaa0] sm:$0xff]
        %v1704 = vld [vmem:[#allocation5 + $0xaa8] sm:$0xff]
        %v1705 = vld [vmem:[#allocation5 + $0xab0] sm:$0xff]
        %v1706 = vld [vmem:[#allocation5 + $0xab8] sm:$0xff]
        %v1707 = vld [vmem:[#allocation5 + $0xac0] sm:$0xff]
        %v1708 = vld [vmem:[#allocation5 + $0xac8] sm:$0xff]
        %v1709 = vld [vmem:[#allocation5 + $0xad0] sm:$0xff]
        %v1710 = vld [vmem:[#allocation5 + $0xad8] sm:$0xff]
        %v1711 = vld [vmem:[#allocation5 + $0xae0] sm:$0xff]
        %v1712 = vld [vmem:[#allocation5 + $0xae8] sm:$0xff]
        %v1713 = vld [vmem:[#allocation5 + $0xaf0] sm:$0xff]
        %v1714 = vld [vmem:[#allocation5 + $0xaf8] sm:$0xff]
        %v1715 = vld [vmem:[#allocation5 + $0xb00] sm:$0xff]
        %v1716 = vld [vmem:[#allocation5 + $0xb08] sm:$0xff]
        %v1717 = vld [vmem:[#allocation5 + $0xb10] sm:$0xff]
        %v1718 = vld [vmem:[#allocation5 + $0xb18] sm:$0xff]
        %v1719 = vld [vmem:[#allocation5 + $0xb20] sm:$0xff]
        %v1720 = vld [vmem:[#allocation5 + $0xb28] sm:$0xff]
        %v1721 = vld [vmem:[#allocation5 + $0xb30] sm:$0xff]
        %v1722 = vld [vmem:[#allocation5 + $0xb38] sm:$0xff]
        %v1723 = vld [vmem:[#allocation5 + $0xb40] sm:$0xff]
        %v1724 = vld [vmem:[#allocation5 + $0xb48] sm:$0xff]
        %v1725 = vld [vmem:[#allocation5 + $0xb50] sm:$0xff]
        %v1726 = vld [vmem:[#allocation5 + $0xb58] sm:$0xff]
        %v1727 = vld [vmem:[#allocation5 + $0xb60] sm:$0xff]
        %v1728 = vld [vmem:[#allocation5 + $0xb68] sm:$0xff]
        %v1729 = vld [vmem:[#allocation5 + $0xb70] sm:$0xff]
        %v1730 = vld [vmem:[#allocation5 + $0xb78] sm:$0xff]
        %v1731 = vld [vmem:[#allocation5 + $0xb80] sm:$0xff]
        %v1732 = vld [vmem:[#allocation5 + $0xb88] sm:$0xff]
        %v1733 = vld [vmem:[#allocation5 + $0xb90] sm:$0xff]
        %v1734 = vld [vmem:[#allocation5 + $0xb98] sm:$0xff]
        %v1735 = vld [vmem:[#allocation5 + $0xba0] sm:$0xff]
        %v1736 = vld [vmem:[#allocation5 + $0xba8] sm:$0xff]
        %v1737 = vld [vmem:[#allocation5 + $0xbb0] sm:$0xff]
        %v1738 = vld [vmem:[#allocation5 + $0xbb8] sm:$0xff]
        %v1739 = vld [vmem:[#allocation5 + $0xbc0] sm:$0xff]
        %v1740 = vld [vmem:[#allocation5 + $0xbc8] sm:$0xff]
        %v1741 = vld [vmem:[#allocation5 + $0xbd0] sm:$0xff]
        %v1742 = vld [vmem:[#allocation5 + $0xbd8] sm:$0xff]
        %v1743 = vld [vmem:[#allocation5 + $0xbe0] sm:$0xff]
        %v1744 = vld [vmem:[#allocation5 + $0xbe8] sm:$0xff]
        %v1745 = vld [vmem:[#allocation5 + $0xbf0] sm:$0xff]
        %v1746 = vld [vmem:[#allocation5 + $0xbf8] sm:$0xff]
        %1747 = vmatpush.msra.mxu0 %v1423
        %1748 = vmatpush.msra.mxu0 %v1419
        %1749 = vmatpush.msra.mxu0 %v1415
        %1750 = vmatpush.msra.mxu0 %v1411
        %1751 = vmatpush.msra.mxu0 %v1407
        %1752 = vmatpush.msra.mxu0 %v1403
        %1753 = vmatpush.msra.mxu0 %v1399
        %1754 = vmatpush.msra.mxu0 %v1395
        %1755 = vmatpush.msra.mxu0 %v1391
        %1756 = vmatpush.msra.mxu0 %v1387
        %1757 = vmatpush.msra.mxu0 %v1383
        %1758 = vmatpush.msra.mxu0 %v1379
        %1759 = vmatpush.msra.mxu0 %v1375
        %1760 = vmatpush.msra.mxu0 %v1371
        %1761 = vmatpush.msra.mxu0 %v1367
        %1762 = vmatpush.msra.mxu0 %v1363
        %1763 = vmatmul.f32.gmra.mxu0 %v1351
        %v1764 = vpop.f32.mrf.mxu0
        %v1765 = vadd.f32 0.0, %v1764
        %1766 = vmatmul.f32.gmra.mxu0 %v1357
        %v1767 = vpop.f32.mrf.mxu0
        %v1768 = vadd.f32 0.0, %v1767
        %1769 = vdwg.mxu0
        %1770 = vmatpush.msra.mxu0 %v1487
        %1771 = vmatpush.msra.mxu0 %v1483
        %1772 = vmatpush.msra.mxu0 %v1479
        %1773 = vmatpush.msra.mxu0 %v1475
        %1774 = vmatpush.msra.mxu0 %v1471
        %1775 = vmatpush.msra.mxu0 %v1467
        %1776 = vmatpush.msra.mxu0 %v1463
        %1777 = vmatpush.msra.mxu0 %v1459
        %1778 = vmatpush.msra.mxu0 %v1455
        %1779 = vmatpush.msra.mxu0 %v1451
        %1780 = vmatpush.msra.mxu0 %v1447
        %1781 = vmatpush.msra.mxu0 %v1443
        %1782 = vmatpush.msra.mxu0 %v1439
        %1783 = vmatpush.msra.mxu0 %v1435
        %1784 = vmatpush.msra.mxu0 %v1431
        %1785 = vmatpush.msra.mxu0 %v1427
        %1786 = vmatmul.f32.gmra.mxu0 %v1352
        %v1787 = vpop.f32.mrf.mxu0
        %v1788 = vadd.f32 %v1765, %v1787
        %1789 = vmatmul.f32.gmra.mxu0 %v1358
        %v1790 = vpop.f32.mrf.mxu0
        %v1791 = vadd.f32 %v1768, %v1790
        %1792 = vdwg.mxu0
        %1793 = vmatpush.msra.mxu0 %v1551
        %1794 = vmatpush.msra.mxu0 %v1547
        %1795 = vmatpush.msra.mxu0 %v1543
        %1796 = vmatpush.msra.mxu0 %v1539
        %1797 = vmatpush.msra.mxu0 %v1535
        %1798 = vmatpush.msra.mxu0 %v1531
        %1799 = vmatpush.msra.mxu0 %v1527
        %1800 = vmatpush.msra.mxu0 %v1523
        %1801 = vmatpush.msra.mxu0 %v1519
        %1802 = vmatpush.msra.mxu0 %v1515
        %1803 = vmatpush.msra.mxu0 %v1511
        %1804 = vmatpush.msra.mxu0 %v1507
        %1805 = vmatpush.msra.mxu0 %v1503
        %1806 = vmatpush.msra.mxu0 %v1499
        %1807 = vmatpush.msra.mxu0 %v1495
        %1808 = vmatpush.msra.mxu0 %v1491
        %1809 = vmatmul.f32.gmra.mxu0 %v1353
        %v1810 = vpop.f32.mrf.mxu0
        %v1811 = vadd.f32 %v1788, %v1810
        %1812 = vmatmul.f32.gmra.mxu0 %v1359
        %v1813 = vpop.f32.mrf.mxu0
        %v1814 = vadd.f32 %v1791, %v1813
        %1815 = vdwg.mxu0
        %1816 = vmatpush.msra.mxu0 %v1615
        %1817 = vmatpush.msra.mxu0 %v1611
        %1818 = vmatpush.msra.mxu0 %v1607
        %1819 = vmatpush.msra.mxu0 %v1603
        %1820 = vmatpush.msra.mxu0 %v1599
        %1821 = vmatpush.msra.mxu0 %v1595
        %1822 = vmatpush.msra.mxu0 %v1591
        %1823 = vmatpush.msra.mxu0 %v1587
        %1824 = vmatpush.msra.mxu0 %v1583
        %1825 = vmatpush.msra.mxu0 %v1579
        %1826 = vmatpush.msra.mxu0 %v1575
        %1827 = vmatpush.msra.mxu0 %v1571
        %1828 = vmatpush.msra.mxu0 %v1567
        %1829 = vmatpush.msra.mxu0 %v1563
        %1830 = vmatpush.msra.mxu0 %v1559
        %1831 = vmatpush.msra.mxu0 %v1555
        %1832 = vmatmul.f32.gmra.mxu0 %v1354
        %v1833 = vpop.f32.mrf.mxu0
        %v1834 = vadd.f32 %v1811, %v1833
        %1835 = vmatmul.f32.gmra.mxu0 %v1360
        %v1836 = vpop.f32.mrf.mxu0
        %v1837 = vadd.f32 %v1814, %v1836
        %1838 = vdwg.mxu0
        %1839 = vmatpush.msra.mxu0 %v1679
        %1840 = vmatpush.msra.mxu0 %v1675
        %1841 = vmatpush.msra.mxu0 %v1671
        %1842 = vmatpush.msra.mxu0 %v1667
        %1843 = vmatpush.msra.mxu0 %v1663
        %1844 = vmatpush.msra.mxu0 %v1659
        %1845 = vmatpush.msra.mxu0 %v1655
        %1846 = vmatpush.msra.mxu0 %v1651
        %1847 = vmatpush.msra.mxu0 %v1647
        %1848 = vmatpush.msra.mxu0 %v1643
        %1849 = vmatpush.msra.mxu0 %v1639
        %1850 = vmatpush.msra.mxu0 %v1635
        %1851 = vmatpush.msra.mxu0 %v1631
        %1852 = vmatpush.msra.mxu0 %v1627
        %1853 = vmatpush.msra.mxu0 %v1623
        %1854 = vmatpush.msra.mxu0 %v1619
        %1855 = vmatmul.f32.gmra.mxu0 %v1355
        %v1856 = vpop.f32.mrf.mxu0
        %v1857 = vadd.f32 %v1834, %v1856
        %1858 = vmatmul.f32.gmra.mxu0 %v1361
        %v1859 = vpop.f32.mrf.mxu0
        %v1860 = vadd.f32 %v1837, %v1859
        %1861 = vdwg.mxu0
        %1862 = vmatpush.msra.mxu0 %v1743
        %1863 = vmatpush.msra.mxu0 %v1739
        %1864 = vmatpush.msra.mxu0 %v1735
        %1865 = vmatpush.msra.mxu0 %v1731
        %1866 = vmatpush.msra.mxu0 %v1727
        %1867 = vmatpush.msra.mxu0 %v1723
        %1868 = vmatpush.msra.mxu0 %v1719
        %1869 = vmatpush.msra.mxu0 %v1715
        %1870 = vmatpush.msra.mxu0 %v1711
        %1871 = vmatpush.msra.mxu0 %v1707
        %1872 = vmatpush.msra.mxu0 %v1703
        %1873 = vmatpush.msra.mxu0 %v1699
        %1874 = vmatpush.msra.mxu0 %v1695
        %1875 = vmatpush.msra.mxu0 %v1691
        %1876 = vmatpush.msra.mxu0 %v1687
        %1877 = vmatpush.msra.mxu0 %v1683
        %1878 = vmatmul.f32.gmra.mxu0 %v1356
        %v1879 = vpop.f32.mrf.mxu0
        %v1880 = vadd.f32 %v1857, %v1879
        %1881 = vmatmul.f32.gmra.mxu0 %v1362
        %v1882 = vpop.f32.mrf.mxu0
        %v1883 = vadd.f32 %v1860, %v1882
        %1884 = vdwg.mxu0
        %1885 = vmatpush.msra.mxu0 %v1424
        %1886 = vmatpush.msra.mxu0 %v1420
        %1887 = vmatpush.msra.mxu0 %v1416
        %1888 = vmatpush.msra.mxu0 %v1412
        %1889 = vmatpush.msra.mxu0 %v1408
        %1890 = vmatpush.msra.mxu0 %v1404
        %1891 = vmatpush.msra.mxu0 %v1400
        %1892 = vmatpush.msra.mxu0 %v1396
        %1893 = vmatpush.msra.mxu0 %v1392
        %1894 = vmatpush.msra.mxu0 %v1388
        %1895 = vmatpush.msra.mxu0 %v1384
        %1896 = vmatpush.msra.mxu0 %v1380
        %1897 = vmatpush.msra.mxu0 %v1376
        %1898 = vmatpush.msra.mxu0 %v1372
        %1899 = vmatpush.msra.mxu0 %v1368
        %1900 = vmatpush.msra.mxu0 %v1364
        %1901 = vmatmul.f32.gmra.mxu0 %v1351
        %v1902 = vpop.f32.mrf.mxu0
        %v1903 = vadd.f32 0.0, %v1902
        %1904 = vmatmul.f32.gmra.mxu0 %v1357
        %v1905 = vpop.f32.mrf.mxu0
        %v1906 = vadd.f32 0.0, %v1905
        %1907 = vdwg.mxu0
        %1908 = vmatpush.msra.mxu0 %v1488
        %1909 = vmatpush.msra.mxu0 %v1484
        %1910 = vmatpush.msra.mxu0 %v1480
        %1911 = vmatpush.msra.mxu0 %v1476
        %1912 = vmatpush.msra.mxu0 %v1472
        %1913 = vmatpush.msra.mxu0 %v1468
        %1914 = vmatpush.msra.mxu0 %v1464
        %1915 = vmatpush.msra.mxu0 %v1460
        %1916 = vmatpush.msra.mxu0 %v1456
        %1917 = vmatpush.msra.mxu0 %v1452
        %1918 = vmatpush.msra.mxu0 %v1448
        %1919 = vmatpush.msra.mxu0 %v1444
        %1920 = vmatpush.msra.mxu0 %v1440
        %1921 = vmatpush.msra.mxu0 %v1436
        %1922 = vmatpush.msra.mxu0 %v1432
        %1923 = vmatpush.msra.mxu0 %v1428
        %1924 = vmatmul.f32.gmra.mxu0 %v1352
        %v1925 = vpop.f32.mrf.mxu0
        %v1926 = vadd.f32 %v1903, %v1925
        %1927 = vmatmul.f32.gmra.mxu0 %v1358
        %v1928 = vpop.f32.mrf.mxu0
        %v1929 = vadd.f32 %v1906, %v1928
        %1930 = vdwg.mxu0
        %1931 = vmatpush.msra.mxu0 %v1552
        %1932 = vmatpush.msra.mxu0 %v1548
        %1933 = vmatpush.msra.mxu0 %v1544
        %1934 = vmatpush.msra.mxu0 %v1540
        %1935 = vmatpush.msra.mxu0 %v1536
        %1936 = vmatpush.msra.mxu0 %v1532
        %1937 = vmatpush.msra.mxu0 %v1528
        %1938 = vmatpush.msra.mxu0 %v1524
        %1939 = vmatpush.msra.mxu0 %v1520
        %1940 = vmatpush.msra.mxu0 %v1516
        %1941 = vmatpush.msra.mxu0 %v1512
        %1942 = vmatpush.msra.mxu0 %v1508
        %1943 = vmatpush.msra.mxu0 %v1504
        %1944 = vmatpush.msra.mxu0 %v1500
        %1945 = vmatpush.msra.mxu0 %v1496
        %1946 = vmatpush.msra.mxu0 %v1492
        %1947 = vmatmul.f32.gmra.mxu0 %v1353
        %v1948 = vpop.f32.mrf.mxu0
        %v1949 = vadd.f32 %v1926, %v1948
        %1950 = vmatmul.f32.gmra.mxu0 %v1359
        %v1951 = vpop.f32.mrf.mxu0
        %v1952 = vadd.f32 %v1929, %v1951
        %1953 = vdwg.mxu0
        %1954 = vmatpush.msra.mxu0 %v1616
        %1955 = vmatpush.msra.mxu0 %v1612
        %1956 = vmatpush.msra.mxu0 %v1608
        %1957 = vmatpush.msra.mxu0 %v1604
        %1958 = vmatpush.msra.mxu0 %v1600
        %1959 = vmatpush.msra.mxu0 %v1596
        %1960 = vmatpush.msra.mxu0 %v1592
        %1961 = vmatpush.msra.mxu0 %v1588
        %1962 = vmatpush.msra.mxu0 %v1584
        %1963 = vmatpush.msra.mxu0 %v1580
        %1964 = vmatpush.msra.mxu0 %v1576
        %1965 = vmatpush.msra.mxu0 %v1572
        %1966 = vmatpush.msra.mxu0 %v1568
        %1967 = vmatpush.msra.mxu0 %v1564
        %1968 = vmatpush.msra.mxu0 %v1560
        %1969 = vmatpush.msra.mxu0 %v1556
        %1970 = vmatmul.f32.gmra.mxu0 %v1354
        %v1971 = vpop.f32.mrf.mxu0
        %v1972 = vadd.f32 %v1949, %v1971
        %1973 = vmatmul.f32.gmra.mxu0 %v1360
        %v1974 = vpop.f32.mrf.mxu0
        %v1975 = vadd.f32 %v1952, %v1974
        %1976 = vdwg.mxu0
        %1977 = vmatpush.msra.mxu0 %v1680
        %1978 = vmatpush.msra.mxu0 %v1676
        %1979 = vmatpush.msra.mxu0 %v1672
        %1980 = vmatpush.msra.mxu0 %v1668
        %1981 = vmatpush.msra.mxu0 %v1664
        %1982 = vmatpush.msra.mxu0 %v1660
        %1983 = vmatpush.msra.mxu0 %v1656
        %1984 = vmatpush.msra.mxu0 %v1652
        %1985 = vmatpush.msra.mxu0 %v1648
        %1986 = vmatpush.msra.mxu0 %v1644
        %1987 = vmatpush.msra.mxu0 %v1640
        %1988 = vmatpush.msra.mxu0 %v1636
        %1989 = vmatpush.msra.mxu0 %v1632
        %1990 = vmatpush.msra.mxu0 %v1628
        %1991 = vmatpush.msra.mxu0 %v1624
        %1992 = vmatpush.msra.mxu0 %v1620
        %1993 = vmatmul.f32.gmra.mxu0 %v1355
        %v1994 = vpop.f32.mrf.mxu0
        %v1995 = vadd.f32 %v1972, %v1994
        %1996 = vmatmul.f32.gmra.mxu0 %v1361
        %v1997 = vpop.f32.mrf.mxu0
        %v1998 = vadd.f32 %v1975, %v1997
        %1999 = vdwg.mxu0
        %2000 = vmatpush.msra.mxu0 %v1744
        %2001 = vmatpush.msra.mxu0 %v1740
        %2002 = vmatpush.msra.mxu0 %v1736
        %2003 = vmatpush.msra.mxu0 %v1732
        %2004 = vmatpush.msra.mxu0 %v1728
        %2005 = vmatpush.msra.mxu0 %v1724
        %2006 = vmatpush.msra.mxu0 %v1720
        %2007 = vmatpush.msra.mxu0 %v1716
        %2008 = vmatpush.msra.mxu0 %v1712
        %2009 = vmatpush.msra.mxu0 %v1708
        %2010 = vmatpush.msra.mxu0 %v1704
        %2011 = vmatpush.msra.mxu0 %v1700
        %2012 = vmatpush.msra.mxu0 %v1696
        %2013 = vmatpush.msra.mxu0 %v1692
        %2014 = vmatpush.msra.mxu0 %v1688
        %2015 = vmatpush.msra.mxu0 %v1684
        %2016 = vmatmul.f32.gmra.mxu0 %v1356
        %v2017 = vpop.f32.mrf.mxu0
        %v2018 = vadd.f32 %v1995, %v2017
        %2019 = vmatmul.f32.gmra.mxu0 %v1362
        %v2020 = vpop.f32.mrf.mxu0
        %v2021 = vadd.f32 %v1998, %v2020
        %2022 = vdwg.mxu0
        %2023 = vmatpush.msra.mxu0 %v1425
        %2024 = vmatpush.msra.mxu0 %v1421
        %2025 = vmatpush.msra.mxu0 %v1417
        %2026 = vmatpush.msra.mxu0 %v1413
        %2027 = vmatpush.msra.mxu0 %v1409
        %2028 = vmatpush.msra.mxu0 %v1405
        %2029 = vmatpush.msra.mxu0 %v1401
        %2030 = vmatpush.msra.mxu0 %v1397
        %2031 = vmatpush.msra.mxu0 %v1393
        %2032 = vmatpush.msra.mxu0 %v1389
        %2033 = vmatpush.msra.mxu0 %v1385
        %2034 = vmatpush.msra.mxu0 %v1381
        %2035 = vmatpush.msra.mxu0 %v1377
        %2036 = vmatpush.msra.mxu0 %v1373
        %2037 = vmatpush.msra.mxu0 %v1369
        %2038 = vmatpush.msra.mxu0 %v1365
        %2039 = vmatmul.f32.gmra.mxu0 %v1351
        %v2040 = vpop.f32.mrf.mxu0
        %v2041 = vadd.f32 0.0, %v2040
        %2042 = vmatmul.f32.gmra.mxu0 %v1357
        %v2043 = vpop.f32.mrf.mxu0
        %v2044 = vadd.f32 0.0, %v2043
        %2045 = vdwg.mxu0
        %2046 = vmatpush.msra.mxu0 %v1489
        %2047 = vmatpush.msra.mxu0 %v1485
        %2048 = vmatpush.msra.mxu0 %v1481
        %2049 = vmatpush.msra.mxu0 %v1477
        %2050 = vmatpush.msra.mxu0 %v1473
        %2051 = vmatpush.msra.mxu0 %v1469
        %2052 = vmatpush.msra.mxu0 %v1465
        %2053 = vmatpush.msra.mxu0 %v1461
        %2054 = vmatpush.msra.mxu0 %v1457
        %2055 = vmatpush.msra.mxu0 %v1453
        %2056 = vmatpush.msra.mxu0 %v1449
        %2057 = vmatpush.msra.mxu0 %v1445
        %2058 = vmatpush.msra.mxu0 %v1441
        %2059 = vmatpush.msra.mxu0 %v1437
        %2060 = vmatpush.msra.mxu0 %v1433
        %2061 = vmatpush.msra.mxu0 %v1429
        %2062 = vmatmul.f32.gmra.mxu0 %v1352
        %v2063 = vpop.f32.mrf.mxu0
        %v2064 = vadd.f32 %v2041, %v2063
        %2065 = vmatmul.f32.gmra.mxu0 %v1358
        %v2066 = vpop.f32.mrf.mxu0
        %v2067 = vadd.f32 %v2044, %v2066
        %2068 = vdwg.mxu0
        %2069 = vmatpush.msra.mxu0 %v1553
        %2070 = vmatpush.msra.mxu0 %v1549
        %2071 = vmatpush.msra.mxu0 %v1545
        %2072 = vmatpush.msra.mxu0 %v1541
        %2073 = vmatpush.msra.mxu0 %v1537
        %2074 = vmatpush.msra.mxu0 %v1533
        %2075 = vmatpush.msra.mxu0 %v1529
        %2076 = vmatpush.msra.mxu0 %v1525
        %2077 = vmatpush.msra.mxu0 %v1521
        %2078 = vmatpush.msra.mxu0 %v1517
        %2079 = vmatpush.msra.mxu0 %v1513
        %2080 = vmatpush.msra.mxu0 %v1509
        %2081 = vmatpush.msra.mxu0 %v1505
        %2082 = vmatpush.msra.mxu0 %v1501
        %2083 = vmatpush.msra.mxu0 %v1497
        %2084 = vmatpush.msra.mxu0 %v1493
        %2085 = vmatmul.f32.gmra.mxu0 %v1353
        %v2086 = vpop.f32.mrf.mxu0
        %v2087 = vadd.f32 %v2064, %v2086
        %2088 = vmatmul.f32.gmra.mxu0 %v1359
        %v2089 = vpop.f32.mrf.mxu0
        %v2090 = vadd.f32 %v2067, %v2089
        %2091 = vdwg.mxu0
        %2092 = vmatpush.msra.mxu0 %v1617
        %2093 = vmatpush.msra.mxu0 %v1613
        %2094 = vmatpush.msra.mxu0 %v1609
        %2095 = vmatpush.msra.mxu0 %v1605
        %2096 = vmatpush.msra.mxu0 %v1601
        %2097 = vmatpush.msra.mxu0 %v1597
        %2098 = vmatpush.msra.mxu0 %v1593
        %2099 = vmatpush.msra.mxu0 %v1589
        %2100 = vmatpush.msra.mxu0 %v1585
        %2101 = vmatpush.msra.mxu0 %v1581
        %2102 = vmatpush.msra.mxu0 %v1577
        %2103 = vmatpush.msra.mxu0 %v1573
        %2104 = vmatpush.msra.mxu0 %v1569
        %2105 = vmatpush.msra.mxu0 %v1565
        %2106 = vmatpush.msra.mxu0 %v1561
        %2107 = vmatpush.msra.mxu0 %v1557
        %2108 = vmatmul.f32.gmra.mxu0 %v1354
        %v2109 = vpop.f32.mrf.mxu0
        %v2110 = vadd.f32 %v2087, %v2109
        %2111 = vmatmul.f32.gmra.mxu0 %v1360
        %v2112 = vpop.f32.mrf.mxu0
        %v2113 = vadd.f32 %v2090, %v2112
        %2114 = vdwg.mxu0
        %2115 = vmatpush.msra.mxu0 %v1681
        %2116 = vmatpush.msra.mxu0 %v1677
        %2117 = vmatpush.msra.mxu0 %v1673
        %2118 = vmatpush.msra.mxu0 %v1669
        %2119 = vmatpush.msra.mxu0 %v1665
        %2120 = vmatpush.msra.mxu0 %v1661
        %2121 = vmatpush.msra.mxu0 %v1657
        %2122 = vmatpush.msra.mxu0 %v1653
        %2123 = vmatpush.msra.mxu0 %v1649
        %2124 = vmatpush.msra.mxu0 %v1645
        %2125 = vmatpush.msra.mxu0 %v1641
        %2126 = vmatpush.msra.mxu0 %v1637
        %2127 = vmatpush.msra.mxu0 %v1633
        %2128 = vmatpush.msra.mxu0 %v1629
        %2129 = vmatpush.msra.mxu0 %v1625
        %2130 = vmatpush.msra.mxu0 %v1621
        %2131 = vmatmul.f32.gmra.mxu0 %v1355
        %v2132 = vpop.f32.mrf.mxu0
        %v2133 = vadd.f32 %v2110, %v2132
        %2134 = vmatmul.f32.gmra.mxu0 %v1361
        %v2135 = vpop.f32.mrf.mxu0
        %v2136 = vadd.f32 %v2113, %v2135
        %2137 = vdwg.mxu0
        %2138 = vmatpush.msra.mxu0 %v1745
        %2139 = vmatpush.msra.mxu0 %v1741
        %2140 = vmatpush.msra.mxu0 %v1737
        %2141 = vmatpush.msra.mxu0 %v1733
        %2142 = vmatpush.msra.mxu0 %v1729
        %2143 = vmatpush.msra.mxu0 %v1725
        %2144 = vmatpush.msra.mxu0 %v1721
        %2145 = vmatpush.msra.mxu0 %v1717
        %2146 = vmatpush.msra.mxu0 %v1713
        %2147 = vmatpush.msra.mxu0 %v1709
        %2148 = vmatpush.msra.mxu0 %v1705
        %2149 = vmatpush.msra.mxu0 %v1701
        %2150 = vmatpush.msra.mxu0 %v1697
        %2151 = vmatpush.msra.mxu0 %v1693
        %2152 = vmatpush.msra.mxu0 %v1689
        %2153 = vmatpush.msra.mxu0 %v1685
        %2154 = vmatmul.f32.gmra.mxu0 %v1356
        %v2155 = vpop.f32.mrf.mxu0
        %v2156 = vadd.f32 %v2133, %v2155
        %2157 = vmatmul.f32.gmra.mxu0 %v1362
        %v2158 = vpop.f32.mrf.mxu0
        %v2159 = vadd.f32 %v2136, %v2158
        %2160 = vdwg.mxu0
        %2161 = vmatpush.msra.mxu0 %v1426
        %2162 = vmatpush.msra.mxu0 %v1422
        %2163 = vmatpush.msra.mxu0 %v1418
        %2164 = vmatpush.msra.mxu0 %v1414
        %2165 = vmatpush.msra.mxu0 %v1410
        %2166 = vmatpush.msra.mxu0 %v1406
        %2167 = vmatpush.msra.mxu0 %v1402
        %2168 = vmatpush.msra.mxu0 %v1398
        %2169 = vmatpush.msra.mxu0 %v1394
        %2170 = vmatpush.msra.mxu0 %v1390
        %2171 = vmatpush.msra.mxu0 %v1386
        %2172 = vmatpush.msra.mxu0 %v1382
        %2173 = vmatpush.msra.mxu0 %v1378
        %2174 = vmatpush.msra.mxu0 %v1374
        %2175 = vmatpush.msra.mxu0 %v1370
        %2176 = vmatpush.msra.mxu0 %v1366
        %2177 = vmatmul.f32.gmra.mxu0 %v1351
        %v2178 = vpop.f32.mrf.mxu0
        %v2179 = vadd.f32 0.0, %v2178
        %2180 = vmatmul.f32.gmra.mxu0 %v1357
        %v2181 = vpop.f32.mrf.mxu0
        %v2182 = vadd.f32 0.0, %v2181
        %2183 = vdwg.mxu0
        %2184 = vmatpush.msra.mxu0 %v1490
        %2185 = vmatpush.msra.mxu0 %v1486
        %2186 = vmatpush.msra.mxu0 %v1482
        %2187 = vmatpush.msra.mxu0 %v1478
        %2188 = vmatpush.msra.mxu0 %v1474
        %2189 = vmatpush.msra.mxu0 %v1470
        %2190 = vmatpush.msra.mxu0 %v1466
        %2191 = vmatpush.msra.mxu0 %v1462
        %2192 = vmatpush.msra.mxu0 %v1458
        %2193 = vmatpush.msra.mxu0 %v1454
        %2194 = vmatpush.msra.mxu0 %v1450
        %2195 = vmatpush.msra.mxu0 %v1446
        %2196 = vmatpush.msra.mxu0 %v1442
        %2197 = vmatpush.msra.mxu0 %v1438
        %2198 = vmatpush.msra.mxu0 %v1434
        %2199 = vmatpush.msra.mxu0 %v1430
        %2200 = vmatmul.f32.gmra.mxu0 %v1352
        %v2201 = vpop.f32.mrf.mxu0
        %v2202 = vadd.f32 %v2179, %v2201
        %2203 = vmatmul.f32.gmra.mxu0 %v1358
        %v2204 = vpop.f32.mrf.mxu0
        %v2205 = vadd.f32 %v2182, %v2204
        %2206 = vdwg.mxu0
        %2207 = vmatpush.msra.mxu0 %v1554
        %2208 = vmatpush.msra.mxu0 %v1550
        %2209 = vmatpush.msra.mxu0 %v1546
        %2210 = vmatpush.msra.mxu0 %v1542
        %2211 = vmatpush.msra.mxu0 %v1538
        %2212 = vmatpush.msra.mxu0 %v1534
        %2213 = vmatpush.msra.mxu0 %v1530
        %2214 = vmatpush.msra.mxu0 %v1526
        %2215 = vmatpush.msra.mxu0 %v1522
        %2216 = vmatpush.msra.mxu0 %v1518
        %2217 = vmatpush.msra.mxu0 %v1514
        %2218 = vmatpush.msra.mxu0 %v1510
        %2219 = vmatpush.msra.mxu0 %v1506
        %2220 = vmatpush.msra.mxu0 %v1502
        %2221 = vmatpush.msra.mxu0 %v1498
        %2222 = vmatpush.msra.mxu0 %v1494
        %2223 = vmatmul.f32.gmra.mxu0 %v1353
        %v2224 = vpop.f32.mrf.mxu0
        %v2225 = vadd.f32 %v2202, %v2224
        %2226 = vmatmul.f32.gmra.mxu0 %v1359
        %v2227 = vpop.f32.mrf.mxu0
        %v2228 = vadd.f32 %v2205, %v2227
        %2229 = vdwg.mxu0
        %2230 = vmatpush.msra.mxu0 %v1618
        %2231 = vmatpush.msra.mxu0 %v1614
        %2232 = vmatpush.msra.mxu0 %v1610
        %2233 = vmatpush.msra.mxu0 %v1606
        %2234 = vmatpush.msra.mxu0 %v1602
        %2235 = vmatpush.msra.mxu0 %v1598
        %2236 = vmatpush.msra.mxu0 %v1594
        %2237 = vmatpush.msra.mxu0 %v1590
        %2238 = vmatpush.msra.mxu0 %v1586
        %2239 = vmatpush.msra.mxu0 %v1582
        %2240 = vmatpush.msra.mxu0 %v1578
        %2241 = vmatpush.msra.mxu0 %v1574
        %2242 = vmatpush.msra.mxu0 %v1570
        %2243 = vmatpush.msra.mxu0 %v1566
        %2244 = vmatpush.msra.mxu0 %v1562
        %2245 = vmatpush.msra.mxu0 %v1558
        %2246 = vmatmul.f32.gmra.mxu0 %v1354
        %v2247 = vpop.f32.mrf.mxu0
        %v2248 = vadd.f32 %v2225, %v2247
        %2249 = vmatmul.f32.gmra.mxu0 %v1360
        %v2250 = vpop.f32.mrf.mxu0
        %v2251 = vadd.f32 %v2228, %v2250
        %2252 = vdwg.mxu0
        %2253 = vmatpush.msra.mxu0 %v1682
        %2254 = vmatpush.msra.mxu0 %v1678
        %2255 = vmatpush.msra.mxu0 %v1674
        %2256 = vmatpush.msra.mxu0 %v1670
        %2257 = vmatpush.msra.mxu0 %v1666
        %2258 = vmatpush.msra.mxu0 %v1662
        %2259 = vmatpush.msra.mxu0 %v1658
        %2260 = vmatpush.msra.mxu0 %v1654
        %2261 = vmatpush.msra.mxu0 %v1650
        %2262 = vmatpush.msra.mxu0 %v1646
        %2263 = vmatpush.msra.mxu0 %v1642
        %2264 = vmatpush.msra.mxu0 %v1638
        %2265 = vmatpush.msra.mxu0 %v1634
        %2266 = vmatpush.msra.mxu0 %v1630
        %2267 = vmatpush.msra.mxu0 %v1626
        %2268 = vmatpush.msra.mxu0 %v1622
        %2269 = vmatmul.f32.gmra.mxu0 %v1355
        %v2270 = vpop.f32.mrf.mxu0
        %v2271 = vadd.f32 %v2248, %v2270
        %2272 = vmatmul.f32.gmra.mxu0 %v1361
        %v2273 = vpop.f32.mrf.mxu0
        %v2274 = vadd.f32 %v2251, %v2273
        %2275 = vdwg.mxu0
        %2276 = vmatpush.msra.mxu0 %v1746
        %2277 = vmatpush.msra.mxu0 %v1742
        %2278 = vmatpush.msra.mxu0 %v1738
        %2279 = vmatpush.msra.mxu0 %v1734
        %2280 = vmatpush.msra.mxu0 %v1730
        %2281 = vmatpush.msra.mxu0 %v1726
        %2282 = vmatpush.msra.mxu0 %v1722
        %2283 = vmatpush.msra.mxu0 %v1718
        %2284 = vmatpush.msra.mxu0 %v1714
        %2285 = vmatpush.msra.mxu0 %v1710
        %2286 = vmatpush.msra.mxu0 %v1706
        %2287 = vmatpush.msra.mxu0 %v1702
        %2288 = vmatpush.msra.mxu0 %v1698
        %2289 = vmatpush.msra.mxu0 %v1694
        %2290 = vmatpush.msra.mxu0 %v1690
        %2291 = vmatpush.msra.mxu0 %v1686
        %2292 = vmatmul.f32.gmra.mxu0 %v1356
        %v2293 = vpop.f32.mrf.mxu0
        %v2294 = vadd.f32 %v2271, %v2293
        %2295 = vmatmul.f32.gmra.mxu0 %v1362
        %v2296 = vpop.f32.mrf.mxu0
        %v2297 = vadd.f32 %v2274, %v2296
        %2298 = vdwg.mxu0
        %2299 = vst [vmem:[#allocation2] sm:$0xff] 0.0
        %2300 = vst [vmem:[#allocation2 + $0x8] sm:$0xff] 0.0
        %2301 = vst [vmem:[#allocation2 + $0x10] sm:$0x7] 0.0
        %v2302 = vld [vmem:[#allocation2] sm:$0xff]
        %v2303 = vld [vmem:[#allocation2 + $0x8] sm:$0xff]
        %v2304 = vadd.f32 %v2302, %v1880
        %v2305 = vadd.f32 %v2303, %v1883
        %2306 = vst [vmem:[#allocation2] sm:$0xff] %v2304
        %2307 = vst [vmem:[#allocation2 + $0x8] sm:$0xff] %v2305
        %v2308 = vld [vmem:[#allocation2 + $0x1] sm:$0xff]
        %v2309 = vld [vmem:[#allocation2 + $0x9] sm:$0xff]
        %v2310 = vadd.f32 %v2308, %v2018
        %v2311 = vadd.f32 %v2309, %v2021
        %2312 = vst [vmem:[#allocation2 + $0x1] sm:$0xff] %v2310
        %2313 = vst [vmem:[#allocation2 + $0x9] sm:$0xff] %v2311
        %v2314 = vld [vmem:[#allocation2 + $0x2] sm:$0xff]
        %v2315 = vld [vmem:[#allocation2 + $0xa] sm:$0xff]
        %v2316 = vadd.f32 %v2314, %v2156
        %v2317 = vadd.f32 %v2315, %v2159
        %2318 = vst [vmem:[#allocation2 + $0x2] sm:$0xff] %v2316
        %2319 = vst [vmem:[#allocation2 + $0xa] sm:$0xff] %v2317
        %v2320 = vld [vmem:[#allocation2 + $0x3] sm:$0xff]
        %v2321 = vld [vmem:[#allocation2 + $0xb] sm:$0xff]
        %v2322 = vadd.f32 %v2320, %v2294
        %v2323 = vadd.f32 %v2321, %v2297
        %2324 = vst [vmem:[#allocation2 + $0x3] sm:$0xff] %v2322
        %2325 = vst [vmem:[#allocation2 + $0xb] sm:$0xff] %v2323
        %v2326 = vld [vmem:[#allocation2 + $0x2] sm:$0xff]
        %v2327 = vld [vmem:[#allocation2 + $0xa] sm:$0x7f]
        %v2328 = vld [vmem:[%s4] sm:$0xff]
        %v2329 = vld [vmem:[%s4 + $0x8] sm:$0x7f]
        %v2330 = vmul.f32 %v2326, %v2328
        %v2331 = vmul.f32 %v2327, %v2329
        %2332 = vst [vmem:[%s272] sm:$0xff] %v2330
        %2333 = vst [vmem:[%s272 + $0x8] sm:$0x7f] %v2331
        %p2334 = scmp.lt.s32.totalorder %s18, 1
        %s2335 = scalar_select %p2334, %s18, 1
        %s2336 = smul.addr %s2335, 2
        %s2337 = smul.addr %s2336, 8
        %s2338 = scalar_lea.vmem %s5, %s2337
        // Predicated region
        $region53: #{tpu_custom_call.1} parent=39 // pred_check
          %p2339 = pneg %p146
        $region54: #{tpu_custom_call.1} parent=39 // pred_check_branch
          %2341 = sbr.rel (%p2339) target = $region56
        $region55: #{tpu_custom_call.1} parent=39 // pred_region
          _
        $region56: #{tpu_custom_call.1} parent=39 // pred_fallthru
          _
      $region40: #{tpu_custom_call.1} parent=5 // pred_fallthru
        _
      %p2342 = scmp.le.s32.totalorder 2, %s13
      // Predicated region
      $region57: #{tpu_custom_call.1} parent=5 // pred_check
        %p2343 = pneg %p2342
      $region58: #{tpu_custom_call.1} parent=5 // pred_check_branch
        %2345 = sbr.rel (%p2343) target = $region60
      $region59: #{tpu_custom_call.1} parent=5 // pred_region
        %s2346 = ssub.s32 %s13, 2
        // Predicated region
        $region61: #{tpu_custom_call.1} parent=59 // pred_check
          %p2347 = pneg %p152
        $region62: #{tpu_custom_call.1} parent=59 // pred_check_branch
          %2349 = sbr.rel (%p2347) target = $region64
        $region63: #{tpu_custom_call.1} parent=59 // pred_region
          %p2350 = scmp.lt.s32.totalorder %s19, 1
          %s2351 = scalar_select %p2350, %s19, 1
          %s2352 = smul.addr %s2351, 2
          %s2353 = smul.addr %s2352, 8
          %s2354 = scalar_lea.vmem %s5, %s2353
        $region64: #{tpu_custom_call.1} parent=59 // pred_fallthru
          _
      $region60: #{tpu_custom_call.1} parent=5 // pred_fallthru
        _
    $region6: #{tpu_custom_call.1} parent=1 // loop_footer
      %s17 = sadd.s32 1, %s13
    $region7: #{tpu_custom_call.1} parent=1 // loop_footer_branch
      %12 = sbr.rel target = $region3
    $region8: #{tpu_custom_call.1} parent=1 // loop_exit
      _
    %2355 = vsyncpa [#allocation4], 1
    %s2356 = scalar_lea.sflag [#allocation4], 1
    %2357 = vsyncpa %s2356, 1
    %2358 = vsyncpa [#allocation6], 1

</llo_original>
